<compile_context>
chip_gen: v5e
topology: v5e:2x2
jax: 0.10.0
libtpu: 0.0.40
codegen_flags: <defaults>
</compile_context>

<pallas_src>
import jax
import jax.numpy as jnp
from jax.experimental import pallas as pl
from jax.experimental.pallas import tpu as pltpu

LANE = 128  # padded channel width (conv channels, fc1 hidden, fc2 out)


def _sentiment_cnn_kernel(x_ref, wk_ref, cb_ref, mask_ref,
                          w1_ref, b1_ref, w2_ref, b2_ref, out_ref):
    TB, L, E = x_ref.shape
    BL = TB * L
    C = cb_ref.shape[-1]                 # padded conv channels (= LANE)
    max_fs = wk_ref.shape[0] // E

    # --- im2row: lane-concat the max_fs time-shifted copies of x (K = max_fs*E) ---
    # rolled_j[t] = x[(t + j) mod BL]; wrapped / cross-sequence rows only ever feed
    # output rows with t >= L - fs + 1 (tap j is nonzero only for j < fs), and those
    # rows are zeroed by the pooling mask below.  Rolls are done in f32 (cheap XLU
    # sublane rotates); the matmul operand is cast back to bf16.
    xf = x_ref[...].reshape(BL, E).astype(jnp.float32)
    cols = [xf]
    for j in range(1, max_fs):
        cols.append(pltpu.roll(xf, shift=BL - j, axis=0))
    xk = jnp.concatenate(cols, axis=1).astype(jnp.bfloat16)        # (BL, max_fs*E)

    # --- fused conv: ONE K-deep, lane-dense MXU matmul for all filters/taps -------
    conv = jnp.dot(xk, wk_ref[...], preferred_element_type=jnp.float32)   # (BL, C)
    conv = jnp.maximum(conv + cb_ref[...], 0.0)                           # bias+ReLU

    # --- masked max-over-time; mask is precomputed & grid-invariant ---------------
    # ReLU output is >= 0, so zeroing invalid rows leaves the max unchanged.
    pooled = jnp.max(conv.reshape(TB, L, C) * mask_ref[...], axis=1)      # (TB, C)

    # --- fc1 + ReLU + fc2: lane-dense 128-wide MXU passes --------------------------
    # TODO(synk): nn.Dropout is identity here (inference semantics); no RNG masking.
    h = jnp.maximum(
        jnp.dot(pooled.astype(jnp.bfloat16), w1_ref[...],
                preferred_element_type=jnp.float32) + b1_ref[...], 0.0)
    out = jnp.dot(h.astype(jnp.bfloat16), w2_ref[...],
                  preferred_element_type=jnp.float32) + b2_ref[...]
    out_ref[...] = out.astype(out_ref.dtype)


def _per_row_bytes(E, max_fs):
    """Approx VMEM bytes per row of the flattened (TB*L) conv working set."""
    return (2 * E * 2                  # x tile, bf16, double-buffered
            + max_fs * E * (4 + 2)     # im2row stack: f32 build + bf16 matmul operand
            + LANE * 4 * 2)            # f32 conv intermediate + masked copy


def _weight_bytes(E, max_fs):
    """Weight/bias/mask blocks, charged at 2x (default double-buffering)."""
    return 2 * ((max_fs * E * LANE + 2 * LANE * LANE) * 2 + 4 * LANE * 4)


def _auto_batch_tile(B, L, E, max_fs, vmem_budget=24 * 1024 * 1024):
    # Target ~1024 conv rows per step (clean multiple of v6e/v7x's 256-tall MXU),
    # keep >= 4 grid steps so v7x's 2 TensorCores both get work with pipeline depth,
    # and stay inside a working-set budget derived for v7x's 64 MiB VMEM.
    tb = max(1, min(B, 1024 // max(L, 1)))
    tb = 1 << (tb.bit_length() - 1)                       # power of two
    while tb > 1 and pl.cdiv(B, tb) < 4:
        tb //= 2
    while tb > 1 and (tb * L * _per_row_bytes(E, max_fs)
                      + _weight_bytes(E, max_fs) + (1 << 20)) > vmem_budget:
        tb //= 2
    return tb


def sentiment_cnn_forward(token_ids, params, filter_sizes, num_filters, *, batch_tile=None):
    """SentimentCNN forward. Returns (B, num_classes) float32 logits."""
    filter_sizes = tuple(filter_sizes)
    F = num_filters
    n_fs = len(filter_sizes)
    max_fs = max(filter_sizes)
    assert n_fs * F <= LANE

    # Embedding lookup (gather) is glue, done in plain JAX; bf16 halves DMA bytes.
    # TODO(synk): for HBM-bound shapes, move the gather in-kernel (scalar-prefetch
    # token ids + per-row DMA) to avoid materializing x in HBM.
    x = jnp.take(params["embedding"], token_ids, axis=0).astype(jnp.bfloat16)  # (B,L,E)
    B, L, E = x.shape
    assert L >= max_fs, "sequence shorter than the largest filter (Conv2d would error)"

    hidden = params["fc1_w"].shape[1]
    num_classes = params["fc2_w"].shape[1]
    assert hidden <= LANE and num_classes <= LANE

    if batch_tile is None:
        batch_tile = _auto_batch_tile(B, L, E, max_fs)
    B_pad = pl.cdiv(B, batch_tile) * batch_tile
    if B_pad != B:
        x = jnp.pad(x, ((0, B_pad - B), (0, 0), (0, 0)))   # extra rows sliced off below

    # im2row weight stack: K-block j (rows [j*E,(j+1)*E)) x lane block [i*F,(i+1)*F)
    # holds tap j of filter_sizes[i]; zero elsewhere (zero padding is exact).
    # The pooling mask is built in the same loop so packing and masking stay coupled:
    # tap j is nonzero only for j <= fs-1, hence every row that can read wrapped
    # (rolled) data is a row with t >= L - fs + 1, which the mask zeroes.
    w_k = jnp.zeros((max_fs * E, LANE), jnp.float32)
    conv_b = jnp.zeros((1, LANE), jnp.float32)
    mask = jnp.zeros((1, L, LANE), jnp.float32)
    for i, fs in enumerate(filter_sizes):
        assert 1 <= fs <= max_fs
        w = params[f"conv{fs}_w"]                          # (fs, E, F)
        for j in range(fs):
            w_k = w_k.at[j * E:(j + 1) * E, i * F:(i + 1) * F].set(w[j])
        conv_b = conv_b.at[:, i * F:(i + 1) * F].set(params[f"conv{fs}_b"])
        mask = mask.at[:, :L - fs + 1, i * F:(i + 1) * F].set(1.0)
    w_k = w_k.astype(jnp.bfloat16)

    # Zero-pad fc weights/biases to lane-dense 128-wide matmuls (numerically exact).
    fc1_w = jnp.zeros((LANE, LANE), jnp.float32
                      ).at[:n_fs * F, :hidden].set(params["fc1_w"]).astype(jnp.bfloat16)
    fc1_b = jnp.zeros((1, LANE), jnp.float32).at[:, :hidden].set(params["fc1_b"])
    fc2_w = jnp.zeros((LANE, LANE), jnp.float32
                      ).at[:hidden, :num_classes].set(params["fc2_w"]).astype(jnp.bfloat16)
    fc2_b = jnp.zeros((1, LANE), jnp.float32).at[:, :num_classes].set(params["fc2_b"])

    const2 = lambda b: (0, 0)       # weights: same block every step (stay resident)
    const3 = lambda b: (0, 0, 0)

    out_pad = pl.pallas_call(
        _sentiment_cnn_kernel,
        out_shape=jax.ShapeDtypeStruct((B_pad, LANE), jnp.float32),
        grid_spec=pltpu.PrefetchScalarGridSpec(
            num_scalar_prefetch=0,
            grid=(B_pad // batch_tile,),
            in_specs=[
                pl.BlockSpec((batch_tile, L, E), lambda b: (b, 0, 0)),
                pl.BlockSpec((max_fs * E, LANE), const2),
                pl.BlockSpec((1, LANE), const2),
                pl.BlockSpec((1, L, LANE), const3),
                pl.BlockSpec((LANE, LANE), const2),
                pl.BlockSpec((1, LANE), const2),
                pl.BlockSpec((LANE, LANE), const2),
                pl.BlockSpec((1, LANE), const2),
            ],
            out_specs=pl.BlockSpec((batch_tile, LANE), lambda b: (b, 0)),
        ),
        compiler_params=pltpu.CompilerParams(
            # Independent batch tiles: shard across v7x's two TensorCores.
            dimension_semantics=("parallel",),
            # Explicit scoped-VMEM budget: 32 MiB is <= physical VMEM on every
            # generation (v5e/v6e 128 MiB, v7x 64 MiB per TC); batch_tile is sized
            # against a 24 MiB working-set budget so this always fits.
            vmem_limit_bytes=32 * 1024 * 1024,
        ),
    )(x, w_k, conv_b, mask, fc1_w, fc1_b, fc2_w, fc2_b)

    return out_pad[:B, :num_classes]


def reference_forward(token_ids, params, filter_sizes):
    """Plain-JAX f32 reference mirroring the PyTorch forward (dropout = identity)."""
    x = jnp.take(params["embedding"], token_ids, axis=0).astype(jnp.float32)
    B, L, _ = x.shape
    pooled = []
    for fs in filter_sizes:
        w = params[f"conv{fs}_w"]
        b = params[f"conv{fs}_b"]
        l_out = L - fs + 1
        acc = jnp.zeros((B, l_out, w.shape[2]), jnp.float32)
        for j in range(fs):
            acc = acc + jnp.einsum("ble,ef->blf", x[:, j:j + l_out, :], w[j])
        acc = jnp.maximum(acc + b, 0.0)
        pooled.append(jnp.max(acc, axis=1))
    feat = jnp.concatenate(pooled, axis=1)
    h = jnp.maximum(feat @ params["fc1_w"] + params["fc1_b"], 0.0)
    return h @ params["fc2_w"] + params["fc2_b"]


def init_params(key, vocab_size, embed_dim, num_filters, filter_sizes,
                hidden_dim, num_classes):
    n_keys = 1 + 2 * len(filter_sizes) + 4
    ks = list(jax.random.split(key, n_keys))
    params = {}
    params["embedding"] = 0.1 * jax.random.normal(
        ks.pop(0), (vocab_size, embed_dim), jnp.float32)
    for fs in filter_sizes:
        # PyTorch Conv2d weight: (F, 1, fs, E)  ->  kernel layout (fs, E, F)
        w_t = 0.1 * jax.random.normal(ks.pop(0), (num_filters, 1, fs, embed_dim),
                                      jnp.float32)
        params[f"conv{fs}_w"] = jnp.transpose(w_t[:, 0], (1, 2, 0))
        params[f"conv{fs}_b"] = 0.1 * jax.random.normal(ks.pop(0), (1, num_filters),
                                                        jnp.float32)
    in_feat = len(filter_sizes) * num_filters
    # PyTorch Linear weight (out, in) -> (in, out)
    params["fc1_w"] = 0.1 * jax.random.normal(ks.pop(0), (in_feat, hidden_dim),
                                              jnp.float32)
    params["fc1_b"] = 0.1 * jax.random.normal(ks.pop(0), (1, hidden_dim), jnp.float32)
    params["fc2_w"] = 0.1 * jax.random.normal(ks.pop(0), (hidden_dim, num_classes),
                                              jnp.float32)
    params["fc2_b"] = 0.1 * jax.random.normal(ks.pop(0), (1, num_classes), jnp.float32)
    return params


if __name__ == "__main__":
    # Small, deterministic configuration consistent with the module.
    VOCAB, EMBED_DIM = 128, 32
    NUM_FILTERS, FILTER_SIZES = 8, (3, 4, 5)
    HIDDEN_DIM, NUM_CLASSES = 64, 2
    BATCH, SEQ_LEN = 64, 16     # auto batch_tile -> 16 (BL = 256 rows, 4 grid steps)

    key = jax.random.PRNGKey(0)
    k_param, k_tok = jax.random.split(key)
    params = init_params(k_param, VOCAB, EMBED_DIM, NUM_FILTERS, FILTER_SIZES,
                         HIDDEN_DIM, NUM_CLASSES)
    token_ids = jax.random.randint(k_tok, (BATCH, SEQ_LEN), 0, VOCAB, jnp.int32)

    out = jax.block_until_ready(
        sentiment_cnn_forward(token_ids, params, FILTER_SIZES, NUM_FILTERS))
    ref = jax.block_until_ready(reference_forward(token_ids, params, FILTER_SIZES))

    assert out.shape == (BATCH, NUM_CLASSES)
    # bf16 activations/weights with f32 accumulation vs f32 reference: ~1e-3 deltas.
    err = float(jnp.max(jnp.abs(out - ref)))
    assert err < 3e-2, f"max abs error {err}"

    print("KERNEL_OK")
</pallas_src>

<mosaic_0001>
module attributes {stable_mosaic.version = 11 : i64} {
  func.func @_sentiment_cnn_kernel(%arg0: i32, %arg1: memref<16x16x32xbf16, #tpu.memory_space<vmem>>, %arg2: memref<160x128xbf16, #tpu.memory_space<vmem>>, %arg3: memref<1x128xf32, #tpu.memory_space<vmem>>, %arg4: memref<1x16x128xf32, #tpu.memory_space<vmem>>, %arg5: memref<128x128xbf16, #tpu.memory_space<vmem>>, %arg6: memref<1x128xf32, #tpu.memory_space<vmem>>, %arg7: memref<128x128xbf16, #tpu.memory_space<vmem>>, %arg8: memref<1x128xf32, #tpu.memory_space<vmem>>, %arg9: memref<16x128xf32, #tpu.memory_space<vmem>>) attributes {dimension_semantics = [#tpu.dimension_semantics<parallel>], iteration_bounds = array<i64: 4>, scalar_prefetch = 0 : i64, scratch_operands = 0 : i64, tpu.core_type = #tpu.core_type<tc>, window_params = [{transform_indices = @transform_0, window_bounds = array<i64: 16, 16, 32>}, {pipeline_mode = #tpu.pipeline_mode<synchronous>, transform_indices = @transform_1, window_bounds = array<i64: 160, 128>}, {pipeline_mode = #tpu.pipeline_mode<synchronous>, transform_indices = @transform_2, window_bounds = array<i64: 1, 128>}, {pipeline_mode = #tpu.pipeline_mode<synchronous>, transform_indices = @transform_3, window_bounds = array<i64: 1, 16, 128>}, {pipeline_mode = #tpu.pipeline_mode<synchronous>, transform_indices = @transform_4, window_bounds = array<i64: 128, 128>}, {pipeline_mode = #tpu.pipeline_mode<synchronous>, transform_indices = @transform_5, window_bounds = array<i64: 1, 128>}, {pipeline_mode = #tpu.pipeline_mode<synchronous>, transform_indices = @transform_6, window_bounds = array<i64: 128, 128>}, {pipeline_mode = #tpu.pipeline_mode<synchronous>, transform_indices = @transform_7, window_bounds = array<i64: 1, 128>}, {transform_indices = @transform_8, window_bounds = array<i64: 16, 128>}]} {
    %c0 = arith.constant 0 : index
    %c0_0 = arith.constant 0 : index
    %c0_1 = arith.constant 0 : index
    %0 = vector.load %arg1[%c0, %c0_0, %c0_1] : memref<16x16x32xbf16, #tpu.memory_space<vmem>>, vector<16x16x32xbf16>
    %1 = vector.shape_cast %0 : vector<16x16x32xbf16> to vector<256x32xbf16>
    %2 = arith.extf %1 : vector<256x32xbf16> to vector<256x32xf32>
    %c255_i32 = arith.constant 255 : i32
    %3 = tpu.dynamic_rotate %2 by %c255_i32 dim 0 : vector<256x32xf32>, i32 -> vector<256x32xf32>
    %c254_i32 = arith.constant 254 : i32
    %4 = tpu.dynamic_rotate %2 by %c254_i32 dim 0 : vector<256x32xf32>, i32 -> vector<256x32xf32>
    %c253_i32 = arith.constant 253 : i32
    %5 = tpu.dynamic_rotate %2 by %c253_i32 dim 0 : vector<256x32xf32>, i32 -> vector<256x32xf32>
    %c252_i32 = arith.constant 252 : i32
    %6 = tpu.dynamic_rotate %2 by %c252_i32 dim 0 : vector<256x32xf32>, i32 -> vector<256x32xf32>
    %7 = tpu.concatenate %2, %3, %4, %5, %6 in 1 : vector<256x32xf32>, vector<256x32xf32>, vector<256x32xf32>, vector<256x32xf32>, vector<256x32xf32> -> vector<256x160xf32>
    %8 = arith.truncf %7 : vector<256x160xf32> to vector<256x160xbf16>
    %c0_2 = arith.constant 0 : index
    %c0_3 = arith.constant 0 : index
    %9 = vector.load %arg2[%c0_2, %c0_3] : memref<160x128xbf16, #tpu.memory_space<vmem>>, vector<160x128xbf16>
    %cst = arith.constant dense<0.000000e+00> : vector<256x128xf32>
    %10 = tpu.matmul %8, %9, %cst {dimension_numbers = #tpu.dot_dimension_numbers<[1], [0], [0], [1], [0, 0, 1, 1], [], []>} : vector<256x160xbf16>, vector<160x128xbf16>, vector<256x128xf32> -> vector<256x128xf32>
    %c0_4 = arith.constant 0 : index
    %c0_5 = arith.constant 0 : index
    %11 = vector.load %arg3[%c0_4, %c0_5] : memref<1x128xf32, #tpu.memory_space<vmem>>, vector<1x128xf32>
    %12 = vector.broadcast %11 : vector<1x128xf32> to vector<256x128xf32>
    %13 = arith.addf %10, %12 : vector<256x128xf32>
    %cst_6 = arith.constant 0.000000e+00 : f32
    %14 = vector.broadcast %cst_6 : f32 to vector<256x128xf32>
    %15 = arith.maximumf %13, %14 : vector<256x128xf32>
    %16 = vector.shape_cast %15 : vector<256x128xf32> to vector<16x16x128xf32>
    %c0_7 = arith.constant 0 : index
    %c0_8 = arith.constant 0 : index
    %c0_9 = arith.constant 0 : index
    %17 = vector.load %arg4[%c0_7, %c0_8, %c0_9] : memref<1x16x128xf32, #tpu.memory_space<vmem>>, vector<1x16x128xf32>
    %18 = vector.broadcast %17 : vector<1x16x128xf32> to vector<16x16x128xf32>
    %19 = arith.mulf %16, %18 : vector<16x16x128xf32>
    %cst_10 = arith.constant dense<0xFF800000> : vector<16x128xf32>
    %20 = vector.multi_reduction <maximumf>, %19, %cst_10 [1] : vector<16x16x128xf32> to vector<16x128xf32>
    %21 = arith.truncf %20 : vector<16x128xf32> to vector<16x128xbf16>
    %c0_11 = arith.constant 0 : index
    %c0_12 = arith.constant 0 : index
    %22 = vector.load %arg5[%c0_11, %c0_12] : memref<128x128xbf16, #tpu.memory_space<vmem>>, vector<128x128xbf16>
    %cst_13 = arith.constant dense<0.000000e+00> : vector<16x128xf32>
    %23 = tpu.matmul %21, %22, %cst_13 {dimension_numbers = #tpu.dot_dimension_numbers<[1], [0], [0], [1], [0, 0, 1, 1], [], []>} : vector<16x128xbf16>, vector<128x128xbf16>, vector<16x128xf32> -> vector<16x128xf32>
    %c0_14 = arith.constant 0 : index
    %c0_15 = arith.constant 0 : index
    %24 = vector.load %arg6[%c0_14, %c0_15] : memref<1x128xf32, #tpu.memory_space<vmem>>, vector<1x128xf32>
    %25 = vector.broadcast %24 : vector<1x128xf32> to vector<16x128xf32>
    %26 = arith.addf %23, %25 : vector<16x128xf32>
    %cst_16 = arith.constant 0.000000e+00 : f32
    %27 = vector.broadcast %cst_16 : f32 to vector<16x128xf32>
    %28 = arith.maximumf %26, %27 : vector<16x128xf32>
    %29 = arith.truncf %28 : vector<16x128xf32> to vector<16x128xbf16>
    %c0_17 = arith.constant 0 : index
    %c0_18 = arith.constant 0 : index
    %30 = vector.load %arg7[%c0_17, %c0_18] : memref<128x128xbf16, #tpu.memory_space<vmem>>, vector<128x128xbf16>
    %cst_19 = arith.constant dense<0.000000e+00> : vector<16x128xf32>
    %31 = tpu.matmul %29, %30, %cst_19 {dimension_numbers = #tpu.dot_dimension_numbers<[1], [0], [0], [1], [0, 0, 1, 1], [], []>} : vector<16x128xbf16>, vector<128x128xbf16>, vector<16x128xf32> -> vector<16x128xf32>
    %c0_20 = arith.constant 0 : index
    %c0_21 = arith.constant 0 : index
    %32 = vector.load %arg8[%c0_20, %c0_21] : memref<1x128xf32, #tpu.memory_space<vmem>>, vector<1x128xf32>
    %33 = vector.broadcast %32 : vector<1x128xf32> to vector<16x128xf32>
    %34 = arith.addf %31, %33 : vector<16x128xf32>
    %c0_22 = arith.constant 0 : index
    %c0_23 = arith.constant 0 : index
    %35 = vector.load %arg9[%c0_22, %c0_23] : memref<16x128xf32, #tpu.memory_space<vmem>>, vector<16x128xf32>
    tpu.vector_store %arg9[%c0_22, %c0_23], %34 {strides = array<i32>} : memref<16x128xf32, #tpu.memory_space<vmem>>, vector<16x128xf32>,
    return
  }
  func.func @transform_0(%arg0: i32) -> (i32, i32, i32) {
    %c0_i32 = arith.constant 0 : i32
    %c0_i32_0 = arith.constant 0 : i32
    %c0_i32_1 = arith.constant 0 : i32
    return %arg0, %c0_i32, %c0_i32_0 : i32, i32, i32
  }
  func.func @transform_1(%arg0: i32) -> (i32, i32) {
    %c0_i32 = arith.constant 0 : i32
    %c0_i32_0 = arith.constant 0 : i32
    %c0_i32_1 = arith.constant 0 : i32
    return %c0_i32, %c0_i32_0 : i32, i32
  }
  func.func @transform_2(%arg0: i32) -> (i32, i32) {
    %c0_i32 = arith.constant 0 : i32
    %c0_i32_0 = arith.constant 0 : i32
    %c0_i32_1 = arith.constant 0 : i32
    return %c0_i32, %c0_i32_0 : i32, i32
  }
  func.func @transform_3(%arg0: i32) -> (i32, i32, i32) {
    %c0_i32 = arith.constant 0 : i32
    %c0_i32_0 = arith.constant 0 : i32
    %c0_i32_1 = arith.constant 0 : i32
    %c0_i32_2 = arith.constant 0 : i32
    return %c0_i32, %c0_i32_0, %c0_i32_1 : i32, i32, i32
  }
  func.func @transform_4(%arg0: i32) -> (i32, i32) {
    %c0_i32 = arith.constant 0 : i32
    %c0_i32_0 = arith.constant 0 : i32
    %c0_i32_1 = arith.constant 0 : i32
    return %c0_i32, %c0_i32_0 : i32, i32
  }
  func.func @transform_5(%arg0: i32) -> (i32, i32) {
    %c0_i32 = arith.constant 0 : i32
    %c0_i32_0 = arith.constant 0 : i32
    %c0_i32_1 = arith.constant 0 : i32
    return %c0_i32, %c0_i32_0 : i32, i32
  }
  func.func @transform_6(%arg0: i32) -> (i32, i32) {
    %c0_i32 = arith.constant 0 : i32
    %c0_i32_0 = arith.constant 0 : i32
    %c0_i32_1 = arith.constant 0 : i32
    return %c0_i32, %c0_i32_0 : i32, i32
  }
  func.func @transform_7(%arg0: i32) -> (i32, i32) {
    %c0_i32 = arith.constant 0 : i32
    %c0_i32_0 = arith.constant 0 : i32
    %c0_i32_1 = arith.constant 0 : i32
    return %c0_i32, %c0_i32_0 : i32, i32
  }
  func.func @transform_8(%arg0: i32) -> (i32, i32) {
    %c0_i32 = arith.constant 0 : i32
    %c0_i32_0 = arith.constant 0 : i32
    return %arg0, %c0_i32 : i32, i32
  }
}

</mosaic_0001>

<llo_original>
// kernel: tpu_custom_call.1
$region0: #{tpu_custom_call.1}
  #allocation0 [shape = 'u32[]', space=smem, size = 0x4, offset = 0x4, fixed_abs, tag = 'smem constant byte address 0x4 - core index']
  #allocation1 [shape = 'u32[72,128]{1,0:T(1,128)}', space=vmem, size = 0x9000, scoped, tag = 'internal scratch']
  %s0 = inlined_call_operand.vmem [shape: bf16[64,16,32], index: 0, kind: input, shape index: {}]
  %s1 = inlined_call_operand.vmem [shape: bf16[160,128], index: 1, kind: input, shape index: {}]
  %s2 = inlined_call_operand.vmem [shape: f32[1,128], index: 2, kind: input, shape index: {}]
  %s3 = inlined_call_operand.vmem [shape: f32[1,16,128], index: 3, kind: input, shape index: {}]
  %s4 = inlined_call_operand.vmem [shape: bf16[128,128], index: 4, kind: input, shape index: {}]
  %s5 = inlined_call_operand.vmem [shape: f32[1,128], index: 5, kind: input, shape index: {}]
  %s6 = inlined_call_operand.vmem [shape: bf16[128,128], index: 6, kind: input, shape index: {}]
  %s7 = inlined_call_operand.vmem [shape: f32[1,128], index: 7, kind: input, shape index: {}]
  %s8 = inlined_call_operand.hbm [shape: f32[64,128], index: 8, kind: output, shape index: {}]
  %s9 = sld [smem:[#allocation0]]
  $region65: #{tpu_custom_call.1} parent=0
    _
  %s11 = ssub.s32 1, %s9
  %s12 = scalar_select 0, %s11, %s9
  $region1: #{tpu_custom_call.1} parent=0
    #allocation2 [shape = 'u8[16384]{0}', space=vmem, size = 0x4000, scoped, tag = 'output window, operand 0']
    #allocation3 [shape = 's32[2]{0}', space=sflag, size = 0x8, scoped, tag = 'scoped memory for tpu_custom_call.1']
    %13 = vsyncpa [#allocation3], 0
    %s14 = scalar_lea.sflag [#allocation3], 1
    %15 = vsyncpa %s14, 0
    loop: start=0, step=1, limit=6
    $region2: #{tpu_custom_call.1} parent=1 // loop_pre_header
      _
    $region3: #{tpu_custom_call.1} parent=1 // loop_header
      %s17 = sphi 0, %s21
      %p18 = scmp.ge.s32.totalorder %s17, 6
      %s27 = sphi 0, %s29
      %s30 = sphi 0, %s27
      %s31 = sphi 0, %s30
      %s47 = sphi 0, %s31
      %s51 = sphi 0, %s51
      %s53 = sphi 0, %s51
      %s54 = sphi 0, %s53
      %s68 = sphi 0, %s54
      %s72 = sphi 0, %s72
      %s74 = sphi 0, %s72
      %s75 = sphi 0, %s74
      %s89 = sphi 0, %s75
      %s93 = sphi 0, %s93
      %s95 = sphi 0, %s93
      %s96 = sphi 0, %s95
      %s110 = sphi 0, %s96
      %s114 = sphi 0, %s114
      %s116 = sphi 0, %s114
      %s117 = sphi 0, %s116
      %s131 = sphi 0, %s117
      %s135 = sphi 0, %s135
      %s137 = sphi 0, %s135
      %s138 = sphi 0, %s137
      %s152 = sphi 0, %s138
      %s156 = sphi 0, %s156
      %s158 = sphi 0, %s156
      %s159 = sphi 0, %s158
      %s173 = sphi 0, %s159
      %s177 = sphi 0, %s177
      %s179 = sphi 0, %s177
      %s180 = sphi 0, %s179
      %s194 = sphi 0, %s180
      %s200 = sphi 0, %s202
      %s203 = sphi 0, %s200
      %s204 = sphi 0, %s203
      %s220 = sphi 0, %s204
    $region4: #{tpu_custom_call.1} parent=1 // loop_header_branch
      %20 = sbr.rel (%p18) target = $region8
    $region5: #{tpu_custom_call.1} parent=1 // loop_body
      %s22 = ssub.s32 %s17, 1
      %s23 = ssub.s32 %s17, 2
      %s24 = sadd.s32 %s17, 1
      %s25 = ssub.s32 %s17, %s24
      %p26 = scmp.eq.s32.totalorder %s25, 0
      %s28 = sadd.s32 %s27, 1
      %s29 = scalar_select %p26, %s27, %s28
      %p32 = pneg %p26
      %p33 = scmp.eq.s32.totalorder %s17, 3
      %p34 = por %p32, %p33
      %p35 = scmp.ne.s32.totalorder %s27, %s30
      %p36 = scmp.eq.s32.totalorder %s17, 0
      %p37 = por %p35, %p36
      %p38 = scmp.ne.s32.totalorder %s27, %s30
      %p39 = scmp.eq.s32.totalorder %s22, 3
      %p40 = por %p38, %p39
      %p41 = scmp.ne.s32.totalorder %s30, %s31
      %p42 = scmp.eq.s32.totalorder %s22, 0
      %p43 = por %p41, %p42
      %p44 = scmp.ne.s32.totalorder %s30, %s31
      %p45 = scmp.eq.s32.totalorder %s23, 3
      %p46 = por %p44, %p45
      %p48 = scmp.ne.s32.totalorder %s31, %s47
      %p49 = scmp.eq.s32.totalorder %s23, 0
      %p50 = por %p48, %p49
      %s52 = sadd.s32 %s51, 1
      %p55 = scmp.eq.s32.totalorder %s17, 3
      %p56 = scmp.ne.s32.totalorder %s51, %s53
      %p57 = scmp.eq.s32.totalorder %s17, 0
      %p58 = por %p56, %p57
      %p59 = scmp.ne.s32.totalorder %s51, %s53
      %p60 = scmp.eq.s32.totalorder %s22, 3
      %p61 = por %p59, %p60
      %p62 = scmp.ne.s32.totalorder %s53, %s54
      %p63 = scmp.eq.s32.totalorder %s22, 0
      %p64 = por %p62, %p63
      %p65 = scmp.ne.s32.totalorder %s53, %s54
      %p66 = scmp.eq.s32.totalorder %s23, 3
      %p67 = por %p65, %p66
      %p69 = scmp.ne.s32.totalorder %s54, %s68
      %p70 = scmp.eq.s32.totalorder %s23, 0
      %p71 = por %p69, %p70
      %s73 = sadd.s32 %s72, 1
      %p76 = scmp.eq.s32.totalorder %s17, 3
      %p77 = scmp.ne.s32.totalorder %s72, %s74
      %p78 = scmp.eq.s32.totalorder %s17, 0
      %p79 = por %p77, %p78
      %p80 = scmp.ne.s32.totalorder %s72, %s74
      %p81 = scmp.eq.s32.totalorder %s22, 3
      %p82 = por %p80, %p81
      %p83 = scmp.ne.s32.totalorder %s74, %s75
      %p84 = scmp.eq.s32.totalorder %s22, 0
      %p85 = por %p83, %p84
      %p86 = scmp.ne.s32.totalorder %s74, %s75
      %p87 = scmp.eq.s32.totalorder %s23, 3
      %p88 = por %p86, %p87
      %p90 = scmp.ne.s32.totalorder %s75, %s89
      %p91 = scmp.eq.s32.totalorder %s23, 0
      %p92 = por %p90, %p91
      %s94 = sadd.s32 %s93, 1
      %p97 = scmp.eq.s32.totalorder %s17, 3
      %p98 = scmp.ne.s32.totalorder %s93, %s95
      %p99 = scmp.eq.s32.totalorder %s17, 0
      %p100 = por %p98, %p99
      %p101 = scmp.ne.s32.totalorder %s93, %s95
      %p102 = scmp.eq.s32.totalorder %s22, 3
      %p103 = por %p101, %p102
      %p104 = scmp.ne.s32.totalorder %s95, %s96
      %p105 = scmp.eq.s32.totalorder %s22, 0
      %p106 = por %p104, %p105
      %p107 = scmp.ne.s32.totalorder %s95, %s96
      %p108 = scmp.eq.s32.totalorder %s23, 3
      %p109 = por %p107, %p108
      %p111 = scmp.ne.s32.totalorder %s96, %s110
      %p112 = scmp.eq.s32.totalorder %s23, 0
      %p113 = por %p111, %p112
      %s115 = sadd.s32 %s114, 1
      %p118 = scmp.eq.s32.totalorder %s17, 3
      %p119 = scmp.ne.s32.totalorder %s114, %s116
      %p120 = scmp.eq.s32.totalorder %s17, 0
      %p121 = por %p119, %p120
      %p122 = scmp.ne.s32.totalorder %s114, %s116
      %p123 = scmp.eq.s32.totalorder %s22, 3
      %p124 = por %p122, %p123
      %p125 = scmp.ne.s32.totalorder %s116, %s117
      %p126 = scmp.eq.s32.totalorder %s22, 0
      %p127 = por %p125, %p126
      %p128 = scmp.ne.s32.totalorder %s116, %s117
      %p129 = scmp.eq.s32.totalorder %s23, 3
      %p130 = por %p128, %p129
      %p132 = scmp.ne.s32.totalorder %s117, %s131
      %p133 = scmp.eq.s32.totalorder %s23, 0
      %p134 = por %p132, %p133
      %s136 = sadd.s32 %s135, 1
      %p139 = scmp.eq.s32.totalorder %s17, 3
      %p140 = scmp.ne.s32.totalorder %s135, %s137
      %p141 = scmp.eq.s32.totalorder %s17, 0
      %p142 = por %p140, %p141
      %p143 = scmp.ne.s32.totalorder %s135, %s137
      %p144 = scmp.eq.s32.totalorder %s22, 3
      %p145 = por %p143, %p144
      %p146 = scmp.ne.s32.totalorder %s137, %s138
      %p147 = scmp.eq.s32.totalorder %s22, 0
      %p148 = por %p146, %p147
      %p149 = scmp.ne.s32.totalorder %s137, %s138
      %p150 = scmp.eq.s32.totalorder %s23, 3
      %p151 = por %p149, %p150
      %p153 = scmp.ne.s32.totalorder %s138, %s152
      %p154 = scmp.eq.s32.totalorder %s23, 0
      %p155 = por %p153, %p154
      %s157 = sadd.s32 %s156, 1
      %p160 = scmp.eq.s32.totalorder %s17, 3
      %p161 = scmp.ne.s32.totalorder %s156, %s158
      %p162 = scmp.eq.s32.totalorder %s17, 0
      %p163 = por %p161, %p162
      %p164 = scmp.ne.s32.totalorder %s156, %s158
      %p165 = scmp.eq.s32.totalorder %s22, 3
      %p166 = por %p164, %p165
      %p167 = scmp.ne.s32.totalorder %s158, %s159
      %p168 = scmp.eq.s32.totalorder %s22, 0
      %p169 = por %p167, %p168
      %p170 = scmp.ne.s32.totalorder %s158, %s159
      %p171 = scmp.eq.s32.totalorder %s23, 3
      %p172 = por %p170, %p171
      %p174 = scmp.ne.s32.totalorder %s159, %s173
      %p175 = scmp.eq.s32.totalorder %s23, 0
      %p176 = por %p174, %p175
      %s178 = sadd.s32 %s177, 1
      %p181 = scmp.eq.s32.totalorder %s17, 3
      %p182 = scmp.ne.s32.totalorder %s177, %s179
      %p183 = scmp.eq.s32.totalorder %s17, 0
      %p184 = por %p182, %p183
      %p185 = scmp.ne.s32.totalorder %s177, %s179
      %p186 = scmp.eq.s32.totalorder %s22, 3
      %p187 = por %p185, %p186
      %p188 = scmp.ne.s32.totalorder %s179, %s180
      %p189 = scmp.eq.s32.totalorder %s22, 0
      %p190 = por %p188, %p189
      %p191 = scmp.ne.s32.totalorder %s179, %s180
      %p192 = scmp.eq.s32.totalorder %s23, 3
      %p193 = por %p191, %p192
      %p195 = scmp.ne.s32.totalorder %s180, %s194
      %p196 = scmp.eq.s32.totalorder %s23, 0
      %p197 = por %p195, %p196
      %s198 = ssub.s32 %s17, %s24
      %p199 = scmp.eq.s32.totalorder %s198, 0
      %s201 = sadd.s32 %s200, 1
      %s202 = scalar_select %p199, %s200, %s201
      %p205 = pneg %p199
      %p206 = scmp.eq.s32.totalorder %s17, 3
      %p207 = por %p205, %p206
      %p208 = scmp.ne.s32.totalorder %s200, %s203
      %p209 = scmp.eq.s32.totalorder %s17, 0
      %p210 = por %p208, %p209
      %p211 = scmp.ne.s32.totalorder %s200, %s203
      %p212 = scmp.eq.s32.totalorder %s22, 3
      %p213 = por %p211, %p212
      %p214 = scmp.ne.s32.totalorder %s203, %s204
      %p215 = scmp.eq.s32.totalorder %s22, 0
      %p216 = por %p214, %p215
      %p217 = scmp.ne.s32.totalorder %s203, %s204
      %p218 = scmp.eq.s32.totalorder %s23, 3
      %p219 = por %p217, %p218
      %p221 = scmp.ne.s32.totalorder %s204, %s220
      %p222 = scmp.eq.s32.totalorder %s23, 0
      %p223 = por %p221, %p222
      %p224 = scmp.le.s32.totalorder 1, %s17
      %p225 = scmp.lt.s32.totalorder %s17, 5
      %p226 = pnand %p224, %p225
      %p227 = pneg %p226
      // Predicated region
      $region9: #{tpu_custom_call.1} parent=5 // pred_check
        _
      $region10: #{tpu_custom_call.1} parent=5 // pred_check_branch
        %229 = sbr.rel (%p226) target = $region12
      $region11: #{tpu_custom_call.1} parent=5 // pred_region
        %s230 = ssub.s32 %s17, 1
        // Predicated region
        $region13: #{tpu_custom_call.1} parent=11 // pred_check
          %p231 = pneg %p64
        $region14: #{tpu_custom_call.1} parent=11 // pred_check_branch
          %233 = sbr.rel (%p231) target = $region16
        $region15: #{tpu_custom_call.1} parent=11 // pred_region
          _
        $region16: #{tpu_custom_call.1} parent=11 // pred_fallthru
          _
        // Predicated region
        $region17: #{tpu_custom_call.1} parent=11 // pred_check
          %p234 = pneg %p85
        $region18: #{tpu_custom_call.1} parent=11 // pred_check_branch
          %236 = sbr.rel (%p234) target = $region20
        $region19: #{tpu_custom_call.1} parent=11 // pred_region
          _
        $region20: #{tpu_custom_call.1} parent=11 // pred_fallthru
          _
        // Predicated region
        $region21: #{tpu_custom_call.1} parent=11 // pred_check
          %p237 = pneg %p106
        $region22: #{tpu_custom_call.1} parent=11 // pred_check_branch
          %239 = sbr.rel (%p237) target = $region24
        $region23: #{tpu_custom_call.1} parent=11 // pred_region
          _
        $region24: #{tpu_custom_call.1} parent=11 // pred_fallthru
          _
        // Predicated region
        $region25: #{tpu_custom_call.1} parent=11 // pred_check
          %p240 = pneg %p127
        $region26: #{tpu_custom_call.1} parent=11 // pred_check_branch
          %242 = sbr.rel (%p240) target = $region28
        $region27: #{tpu_custom_call.1} parent=11 // pred_region
          _
        $region28: #{tpu_custom_call.1} parent=11 // pred_fallthru
          _
        // Predicated region
        $region29: #{tpu_custom_call.1} parent=11 // pred_check
          %p243 = pneg %p148
        $region30: #{tpu_custom_call.1} parent=11 // pred_check_branch
          %245 = sbr.rel (%p243) target = $region32
        $region31: #{tpu_custom_call.1} parent=11 // pred_region
          _
        $region32: #{tpu_custom_call.1} parent=11 // pred_fallthru
          _
        // Predicated region
        $region33: #{tpu_custom_call.1} parent=11 // pred_check
          %p246 = pneg %p169
        $region34: #{tpu_custom_call.1} parent=11 // pred_check_branch
          %248 = sbr.rel (%p246) target = $region36
        $region35: #{tpu_custom_call.1} parent=11 // pred_region
          _
        $region36: #{tpu_custom_call.1} parent=11 // pred_fallthru
          _
        // Predicated region
        $region37: #{tpu_custom_call.1} parent=11 // pred_check
          %p249 = pneg %p190
        $region38: #{tpu_custom_call.1} parent=11 // pred_check_branch
          %251 = sbr.rel (%p249) target = $region40
        $region39: #{tpu_custom_call.1} parent=11 // pred_region
          _
        $region40: #{tpu_custom_call.1} parent=11 // pred_fallthru
          _
      $region12: #{tpu_custom_call.1} parent=5 // pred_fallthru
        _
      %p252 = scmp.lt.s32.totalorder %s17, 4
      // Predicated region
      $region41: #{tpu_custom_call.1} parent=5 // pred_check
        %p253 = pneg %p252
      $region42: #{tpu_custom_call.1} parent=5 // pred_check_branch
        %255 = sbr.rel (%p253) target = $region44
      $region43: #{tpu_custom_call.1} parent=5 // pred_region
        // Predicated region
        $region45: #{tpu_custom_call.1} parent=43 // pred_check
          %p256 = pneg %p37
        $region46: #{tpu_custom_call.1} parent=43 // pred_check_branch
          %258 = sbr.rel (%p256) target = $region48
        $region47: #{tpu_custom_call.1} parent=43 // pred_region
          %s259 = smul.u32 16, %s17
          %p260 = scmp.lt.s32.totalorder %s259, 63
          %s261 = scalar_select %p260, %s259, 63
          %s262 = smul.addr %s261, 2
          %s263 = smul.addr %s262, 4
          %s264 = scalar_lea.vmem %s0, %s263
          %s265 = smul.u32 16, %s17
        $region48: #{tpu_custom_call.1} parent=43 // pred_fallthru
          _
      $region44: #{tpu_custom_call.1} parent=5 // pred_fallthru
        _
      %p266 = scmp.le.s32.totalorder 1, %s17
      %p267 = scmp.lt.s32.totalorder %s17, 5
      %p268 = pnand %p266, %p267
      %p269 = pneg %p268
      // Predicated region
      $region49: #{tpu_custom_call.1} parent=5 // pred_check
        _
      $region50: #{tpu_custom_call.1} parent=5 // pred_check_branch
        %271 = sbr.rel (%p268) target = $region52
      $region51: #{tpu_custom_call.1} parent=5 // pred_region
        %s272 = ssub.s32 %s17, 1
        %s273 = smul.u32 16, %s22
        %p274 = scmp.lt.s32.totalorder %s273, 63
        %s275 = scalar_select %p274, %s273, 63
        %s276 = smul.addr %s275, 2
        %s277 = smul.addr %s276, 4
        %s278 = scalar_lea.vmem %s0, %s277
        %p279 = pneg %p43
        %p280 = pneg %p40
        %p281 = pneg %p64
        %p282 = pneg %p61
        %p283 = pneg %p85
        %p284 = pneg %p82
        %p285 = pneg %p106
        %p286 = pneg %p103
        %p287 = pneg %p127
        %p288 = pneg %p124
        %p289 = pneg %p148
        %p290 = pneg %p145
        %p291 = pneg %p169
        %p292 = pneg %p166
        %p293 = pneg %p190
        %p294 = pneg %p187
        %p295 = pneg %p216
        %p296 = pneg %p213
        %s297 = sand.u32 %s203, 1
        %s298 = scalar_lea.sflag [#allocation3], %s297
        %s299 = sand.u32 %s203, 1
        %s300 = smul.addr %s299, 16
        %s301 = scalar_lea.vmem [#allocation2], %s300
        %s302 = smul.u32 16, %s22
        %p303 = scmp.lt.s32.totalorder %s302, 63
        %s304 = scalar_select %p303, %s302, 63
        %s305 = smul.addr %s304, 2
        %s306 = smul.addr %s305, 4
        %s307 = scalar_lea.vmem %s0, %s306
        %s308 = smul.u32 16, %s22
        %s309 = smul.u32 2, %s22
        %v311 = vld [vmem:[%s307] sm:$0xf]
        %v312 = vld [vmem:[%s307 + $0x4] sm:$0xf]
        %v313 = vld [vmem:[%s307 + $0x8] sm:$0xf]
        %v314 = vld [vmem:[%s307 + $0xc] sm:$0xf]
        %v315 = vld [vmem:[%s307 + $0x10] sm:$0xf]
        %v316 = vld [vmem:[%s307 + $0x14] sm:$0xf]
        %v317 = vld [vmem:[%s307 + $0x18] sm:$0xf]
        %v318 = vld [vmem:[%s307 + $0x1c] sm:$0xf]
        %v319 = vld [vmem:[%s307 + $0x20] sm:$0xf]
        %v320 = vld [vmem:[%s307 + $0x24] sm:$0xf]
        %v321 = vld [vmem:[%s307 + $0x28] sm:$0xf]
        %v322 = vld [vmem:[%s307 + $0x2c] sm:$0xf]
        %v323 = vld [vmem:[%s307 + $0x30] sm:$0xf]
        %v324 = vld [vmem:[%s307 + $0x34] sm:$0xf]
        %v325 = vld [vmem:[%s307 + $0x38] sm:$0xf]
        %v326 = vld [vmem:[%s307 + $0x3c] sm:$0xf]
        %v327 = vld [vmem:[%s307 + $0x40] sm:$0xf]
        %v328 = vld [vmem:[%s307 + $0x44] sm:$0xf]
        %v329 = vld [vmem:[%s307 + $0x48] sm:$0xf]
        %v330 = vld [vmem:[%s307 + $0x4c] sm:$0xf]
        %v331 = vld [vmem:[%s307 + $0x50] sm:$0xf]
        %v332 = vld [vmem:[%s307 + $0x54] sm:$0xf]
        %v333 = vld [vmem:[%s307 + $0x58] sm:$0xf]
        %v334 = vld [vmem:[%s307 + $0x5c] sm:$0xf]
        %v335 = vld [vmem:[%s307 + $0x60] sm:$0xf]
        %v336 = vld [vmem:[%s307 + $0x64] sm:$0xf]
        %v337 = vld [vmem:[%s307 + $0x68] sm:$0xf]
        %v338 = vld [vmem:[%s307 + $0x6c] sm:$0xf]
        %v339 = vld [vmem:[%s307 + $0x70] sm:$0xf]
        %v340 = vld [vmem:[%s307 + $0x74] sm:$0xf]
        %v341 = vld [vmem:[%s307 + $0x78] sm:$0xf]
        %v342 = vld [vmem:[%s307 + $0x7c] sm:$0xf]
        %v343 = vunpack.c.l.bf16 %v311
        %v344 = vunpack.c.l.bf16 %v312
        %v345 = vunpack.c.l.bf16 %v313
        %v346 = vunpack.c.l.bf16 %v314
        %v347 = vunpack.c.l.bf16 %v315
        %v348 = vunpack.c.l.bf16 %v316
        %v349 = vunpack.c.l.bf16 %v317
        %v350 = vunpack.c.l.bf16 %v318
        %v351 = vunpack.c.l.bf16 %v319
        %v352 = vunpack.c.l.bf16 %v320
        %v353 = vunpack.c.l.bf16 %v321
        %v354 = vunpack.c.l.bf16 %v322
        %v355 = vunpack.c.l.bf16 %v323
        %v356 = vunpack.c.l.bf16 %v324
        %v357 = vunpack.c.l.bf16 %v325
        %v358 = vunpack.c.l.bf16 %v326
        %v359 = vunpack.c.l.bf16 %v327
        %v360 = vunpack.c.l.bf16 %v328
        %v361 = vunpack.c.l.bf16 %v329
        %v362 = vunpack.c.l.bf16 %v330
        %v363 = vunpack.c.l.bf16 %v331
        %v364 = vunpack.c.l.bf16 %v332
        %v365 = vunpack.c.l.bf16 %v333
        %v366 = vunpack.c.l.bf16 %v334
        %v367 = vunpack.c.l.bf16 %v335
        %v368 = vunpack.c.l.bf16 %v336
        %v369 = vunpack.c.l.bf16 %v337
        %v370 = vunpack.c.l.bf16 %v338
        %v371 = vunpack.c.l.bf16 %v339
        %v372 = vunpack.c.l.bf16 %v340
        %v373 = vunpack.c.l.bf16 %v341
        %v374 = vunpack.c.l.bf16 %v342
        %v375 = vrot.slane %v343, 1
        %v376 = vrot.slane %v344, 1
        %v377 = vrot.slane %v345, 1
        %v378 = vrot.slane %v346, 1
        %v379 = vrot.slane %v347, 1
        %v380 = vrot.slane %v348, 1
        %v381 = vrot.slane %v349, 1
        %v382 = vrot.slane %v350, 1
        %v383 = vrot.slane %v351, 1
        %v384 = vrot.slane %v352, 1
        %v385 = vrot.slane %v353, 1
        %v386 = vrot.slane %v354, 1
        %v387 = vrot.slane %v355, 1
        %v388 = vrot.slane %v356, 1
        %v389 = vrot.slane %v357, 1
        %v390 = vrot.slane %v358, 1
        %v391 = vrot.slane %v359, 1
        %v392 = vrot.slane %v360, 1
        %v393 = vrot.slane %v361, 1
        %v394 = vrot.slane %v362, 1
        %v395 = vrot.slane %v363, 1
        %v396 = vrot.slane %v364, 1
        %v397 = vrot.slane %v365, 1
        %v398 = vrot.slane %v366, 1
        %v399 = vrot.slane %v367, 1
        %v400 = vrot.slane %v368, 1
        %v401 = vrot.slane %v369, 1
        %v402 = vrot.slane %v370, 1
        %v403 = vrot.slane %v371, 1
        %v404 = vrot.slane %v372, 1
        %v405 = vrot.slane %v373, 1
        %v406 = vrot.slane %v374, 1
        %v407 = vlaneseq
        %v408 = vshrl.u32 %v407, 7
        %vm409 = vcmp.lt.s32.totalorder %v408, 7
        %v410 = vsel %vm409, %v405, %v406
        %v411 = vsel %vm409, %v404, %v405
        %v412 = vsel %vm409, %v403, %v404
        %v413 = vsel %vm409, %v402, %v403
        %v414 = vsel %vm409, %v401, %v402
        %v415 = vsel %vm409, %v400, %v401
        %v416 = vsel %vm409, %v399, %v400
        %v417 = vsel %vm409, %v398, %v399
        %v418 = vsel %vm409, %v397, %v398
        %v419 = vsel %vm409, %v396, %v397
        %v420 = vsel %vm409, %v395, %v396
        %v421 = vsel %vm409, %v394, %v395
        %v422 = vsel %vm409, %v393, %v394
        %v423 = vsel %vm409, %v392, %v393
        %v424 = vsel %vm409, %v391, %v392
        %v425 = vsel %vm409, %v390, %v391
        %v426 = vsel %vm409, %v389, %v390
        %v427 = vsel %vm409, %v388, %v389
        %v428 = vsel %vm409, %v387, %v388
        %v429 = vsel %vm409, %v386, %v387
        %v430 = vsel %vm409, %v385, %v386
        %v431 = vsel %vm409, %v384, %v385
        %v432 = vsel %vm409, %v383, %v384
        %v433 = vsel %vm409, %v382, %v383
        %v434 = vsel %vm409, %v381, %v382
        %v435 = vsel %vm409, %v380, %v381
        %v436 = vsel %vm409, %v379, %v380
        %v437 = vsel %vm409, %v378, %v379
        %v438 = vsel %vm409, %v377, %v378
        %v439 = vsel %vm409, %v376, %v377
        %v440 = vsel %vm409, %v375, %v376
        %v441 = vsel %vm409, %v406, %v375
        %v442 = vrot.slane %v343, 2
        %v443 = vrot.slane %v344, 2
        %v444 = vrot.slane %v345, 2
        %v445 = vrot.slane %v346, 2
        %v446 = vrot.slane %v347, 2
        %v447 = vrot.slane %v348, 2
        %v448 = vrot.slane %v349, 2
        %v449 = vrot.slane %v350, 2
        %v450 = vrot.slane %v351, 2
        %v451 = vrot.slane %v352, 2
        %v452 = vrot.slane %v353, 2
        %v453 = vrot.slane %v354, 2
        %v454 = vrot.slane %v355, 2
        %v455 = vrot.slane %v356, 2
        %v456 = vrot.slane %v357, 2
        %v457 = vrot.slane %v358, 2
        %v458 = vrot.slane %v359, 2
        %v459 = vrot.slane %v360, 2
        %v460 = vrot.slane %v361, 2
        %v461 = vrot.slane %v362, 2
        %v462 = vrot.slane %v363, 2
        %v463 = vrot.slane %v364, 2
        %v464 = vrot.slane %v365, 2
        %v465 = vrot.slane %v366, 2
        %v466 = vrot.slane %v367, 2
        %v467 = vrot.slane %v368, 2
        %v468 = vrot.slane %v369, 2
        %v469 = vrot.slane %v370, 2
        %v470 = vrot.slane %v371, 2
        %v471 = vrot.slane %v372, 2
        %v472 = vrot.slane %v373, 2
        %v473 = vrot.slane %v374, 2
        %vm474 = vcmp.lt.s32.totalorder %v408, 6
        %v475 = vsel %vm474, %v472, %v473
        %v476 = vsel %vm474, %v471, %v472
        %v477 = vsel %vm474, %v470, %v471
        %v478 = vsel %vm474, %v469, %v470
        %v479 = vsel %vm474, %v468, %v469
        %v480 = vsel %vm474, %v467, %v468
        %v481 = vsel %vm474, %v466, %v467
        %v482 = vsel %vm474, %v465, %v466
        %v483 = vsel %vm474, %v464, %v465
        %v484 = vsel %vm474, %v463, %v464
        %v485 = vsel %vm474, %v462, %v463
        %v486 = vsel %vm474, %v461, %v462
        %v487 = vsel %vm474, %v460, %v461
        %v488 = vsel %vm474, %v459, %v460
        %v489 = vsel %vm474, %v458, %v459
        %v490 = vsel %vm474, %v457, %v458
        %v491 = vsel %vm474, %v456, %v457
        %v492 = vsel %vm474, %v455, %v456
        %v493 = vsel %vm474, %v454, %v455
        %v494 = vsel %vm474, %v453, %v454
        %v495 = vsel %vm474, %v452, %v453
        %v496 = vsel %vm474, %v451, %v452
        %v497 = vsel %vm474, %v450, %v451
        %v498 = vsel %vm474, %v449, %v450
        %v499 = vsel %vm474, %v448, %v449
        %v500 = vsel %vm474, %v447, %v448
        %v501 = vsel %vm474, %v446, %v447
        %v502 = vsel %vm474, %v445, %v446
        %v503 = vsel %vm474, %v444, %v445
        %v504 = vsel %vm474, %v443, %v444
        %v505 = vsel %vm474, %v442, %v443
        %v506 = vsel %vm474, %v473, %v442
        %v507 = vrot.slane %v343, 3
        %v508 = vrot.slane %v344, 3
        %v509 = vrot.slane %v345, 3
        %v510 = vrot.slane %v346, 3
        %v511 = vrot.slane %v347, 3
        %v512 = vrot.slane %v348, 3
        %v513 = vrot.slane %v349, 3
        %v514 = vrot.slane %v350, 3
        %v515 = vrot.slane %v351, 3
        %v516 = vrot.slane %v352, 3
        %v517 = vrot.slane %v353, 3
        %v518 = vrot.slane %v354, 3
        %v519 = vrot.slane %v355, 3
        %v520 = vrot.slane %v356, 3
        %v521 = vrot.slane %v357, 3
        %v522 = vrot.slane %v358, 3
        %v523 = vrot.slane %v359, 3
        %v524 = vrot.slane %v360, 3
        %v525 = vrot.slane %v361, 3
        %v526 = vrot.slane %v362, 3
        %v527 = vrot.slane %v363, 3
        %v528 = vrot.slane %v364, 3
        %v529 = vrot.slane %v365, 3
        %v530 = vrot.slane %v366, 3
        %v531 = vrot.slane %v367, 3
        %v532 = vrot.slane %v368, 3
        %v533 = vrot.slane %v369, 3
        %v534 = vrot.slane %v370, 3
        %v535 = vrot.slane %v371, 3
        %v536 = vrot.slane %v372, 3
        %v537 = vrot.slane %v373, 3
        %v538 = vrot.slane %v374, 3
        %vm539 = vcmp.lt.s32.totalorder %v408, 5
        %v540 = vsel %vm539, %v537, %v538
        %v541 = vsel %vm539, %v536, %v537
        %v542 = vsel %vm539, %v535, %v536
        %v543 = vsel %vm539, %v534, %v535
        %v544 = vsel %vm539, %v533, %v534
        %v545 = vsel %vm539, %v532, %v533
        %v546 = vsel %vm539, %v531, %v532
        %v547 = vsel %vm539, %v530, %v531
        %v548 = vsel %vm539, %v529, %v530
        %v549 = vsel %vm539, %v528, %v529
        %v550 = vsel %vm539, %v527, %v528
        %v551 = vsel %vm539, %v526, %v527
        %v552 = vsel %vm539, %v525, %v526
        %v553 = vsel %vm539, %v524, %v525
        %v554 = vsel %vm539, %v523, %v524
        %v555 = vsel %vm539, %v522, %v523
        %v556 = vsel %vm539, %v521, %v522
        %v557 = vsel %vm539, %v520, %v521
        %v558 = vsel %vm539, %v519, %v520
        %v559 = vsel %vm539, %v518, %v519
        %v560 = vsel %vm539, %v517, %v518
        %v561 = vsel %vm539, %v516, %v517
        %v562 = vsel %vm539, %v515, %v516
        %v563 = vsel %vm539, %v514, %v515
        %v564 = vsel %vm539, %v513, %v514
        %v565 = vsel %vm539, %v512, %v513
        %v566 = vsel %vm539, %v511, %v512
        %v567 = vsel %vm539, %v510, %v511
        %v568 = vsel %vm539, %v509, %v510
        %v569 = vsel %vm539, %v508, %v509
        %v570 = vsel %vm539, %v507, %v508
        %v571 = vsel %vm539, %v538, %v507
        %v572 = vrot.slane %v343, 4
        %v573 = vrot.slane %v344, 4
        %v574 = vrot.slane %v345, 4
        %v575 = vrot.slane %v346, 4
        %v576 = vrot.slane %v347, 4
        %v577 = vrot.slane %v348, 4
        %v578 = vrot.slane %v349, 4
        %v579 = vrot.slane %v350, 4
        %v580 = vrot.slane %v351, 4
        %v581 = vrot.slane %v352, 4
        %v582 = vrot.slane %v353, 4
        %v583 = vrot.slane %v354, 4
        %v584 = vrot.slane %v355, 4
        %v585 = vrot.slane %v356, 4
        %v586 = vrot.slane %v357, 4
        %v587 = vrot.slane %v358, 4
        %v588 = vrot.slane %v359, 4
        %v589 = vrot.slane %v360, 4
        %v590 = vrot.slane %v361, 4
        %v591 = vrot.slane %v362, 4
        %v592 = vrot.slane %v363, 4
        %v593 = vrot.slane %v364, 4
        %v594 = vrot.slane %v365, 4
        %v595 = vrot.slane %v366, 4
        %v596 = vrot.slane %v367, 4
        %v597 = vrot.slane %v368, 4
        %v598 = vrot.slane %v369, 4
        %v599 = vrot.slane %v370, 4
        %v600 = vrot.slane %v371, 4
        %v601 = vrot.slane %v372, 4
        %v602 = vrot.slane %v373, 4
        %v603 = vrot.slane %v374, 4
        %vm604 = vcmp.lt.s32.totalorder %v408, 4
        %v605 = vsel %vm604, %v602, %v603
        %v606 = vsel %vm604, %v601, %v602
        %v607 = vsel %vm604, %v600, %v601
        %v608 = vsel %vm604, %v599, %v600
        %v609 = vsel %vm604, %v598, %v599
        %v610 = vsel %vm604, %v597, %v598
        %v611 = vsel %vm604, %v596, %v597
        %v612 = vsel %vm604, %v595, %v596
        %v613 = vsel %vm604, %v594, %v595
        %v614 = vsel %vm604, %v593, %v594
        %v615 = vsel %vm604, %v592, %v593
        %v616 = vsel %vm604, %v591, %v592
        %v617 = vsel %vm604, %v590, %v591
        %v618 = vsel %vm604, %v589, %v590
        %v619 = vsel %vm604, %v588, %v589
        %v620 = vsel %vm604, %v587, %v588
        %v621 = vsel %vm604, %v586, %v587
        %v622 = vsel %vm604, %v585, %v586
        %v623 = vsel %vm604, %v584, %v585
        %v624 = vsel %vm604, %v583, %v584
        %v625 = vsel %vm604, %v582, %v583
        %v626 = vsel %vm604, %v581, %v582
        %v627 = vsel %vm604, %v580, %v581
        %v628 = vsel %vm604, %v579, %v580
        %v629 = vsel %vm604, %v578, %v579
        %v630 = vsel %vm604, %v577, %v578
        %v631 = vsel %vm604, %v576, %v577
        %v632 = vsel %vm604, %v575, %v576
        %v633 = vsel %vm604, %v574, %v575
        %v634 = vsel %vm604, %v573, %v574
        %v635 = vsel %vm604, %v572, %v573
        %v636 = vsel %vm604, %v603, %v572
        %669 = vrot.lane.b32.xlu0 %v440, 32
        %v670 = vpop.permute.xlu0 %669
        %671 = vrot.lane.b32.xlu0 %v439, 32
        %v672 = vpop.permute.xlu0 %671
        %673 = vrot.lane.b32.xlu0 %v438, 32
        %v674 = vpop.permute.xlu0 %673
        %675 = vrot.lane.b32.xlu0 %v437, 32
        %v676 = vpop.permute.xlu0 %675
        %677 = vrot.lane.b32.xlu0 %v436, 32
        %v678 = vpop.permute.xlu0 %677
        %679 = vrot.lane.b32.xlu0 %v435, 32
        %v680 = vpop.permute.xlu0 %679
        %681 = vrot.lane.b32.xlu0 %v434, 32
        %v682 = vpop.permute.xlu0 %681
        %683 = vrot.lane.b32.xlu0 %v433, 32
        %v684 = vpop.permute.xlu0 %683
        %685 = vrot.lane.b32.xlu0 %v432, 32
        %v686 = vpop.permute.xlu0 %685
        %687 = vrot.lane.b32.xlu0 %v431, 32
        %v688 = vpop.permute.xlu0 %687
        %689 = vrot.lane.b32.xlu0 %v430, 32
        %v690 = vpop.permute.xlu0 %689
        %691 = vrot.lane.b32.xlu0 %v429, 32
        %v692 = vpop.permute.xlu0 %691
        %693 = vrot.lane.b32.xlu0 %v428, 32
        %v694 = vpop.permute.xlu0 %693
        %695 = vrot.lane.b32.xlu0 %v427, 32
        %v696 = vpop.permute.xlu0 %695
        %697 = vrot.lane.b32.xlu0 %v426, 32
        %v698 = vpop.permute.xlu0 %697
        %699 = vrot.lane.b32.xlu0 %v425, 32
        %v700 = vpop.permute.xlu0 %699
        %701 = vrot.lane.b32.xlu0 %v424, 32
        %v702 = vpop.permute.xlu0 %701
        %703 = vrot.lane.b32.xlu0 %v423, 32
        %v704 = vpop.permute.xlu0 %703
        %705 = vrot.lane.b32.xlu0 %v422, 32
        %v706 = vpop.permute.xlu0 %705
        %707 = vrot.lane.b32.xlu0 %v421, 32
        %v708 = vpop.permute.xlu0 %707
        %709 = vrot.lane.b32.xlu0 %v420, 32
        %v710 = vpop.permute.xlu0 %709
        %711 = vrot.lane.b32.xlu0 %v419, 32
        %v712 = vpop.permute.xlu0 %711
        %713 = vrot.lane.b32.xlu0 %v418, 32
        %v714 = vpop.permute.xlu0 %713
        %715 = vrot.lane.b32.xlu0 %v417, 32
        %v716 = vpop.permute.xlu0 %715
        %717 = vrot.lane.b32.xlu0 %v416, 32
        %v718 = vpop.permute.xlu0 %717
        %719 = vrot.lane.b32.xlu0 %v415, 32
        %v720 = vpop.permute.xlu0 %719
        %721 = vrot.lane.b32.xlu0 %v414, 32
        %v722 = vpop.permute.xlu0 %721
        %723 = vrot.lane.b32.xlu0 %v413, 32
        %v724 = vpop.permute.xlu0 %723
        %725 = vrot.lane.b32.xlu0 %v412, 32
        %v726 = vpop.permute.xlu0 %725
        %727 = vrot.lane.b32.xlu0 %v411, 32
        %v728 = vpop.permute.xlu0 %727
        %729 = vrot.lane.b32.xlu0 %v410, 32
        %v730 = vpop.permute.xlu0 %729
        %731 = vrot.lane.b32.xlu0 %v441, 32
        %v732 = vpop.permute.xlu0 %731
        %797 = vrot.lane.b32.xlu0 %v505, 64
        %v798 = vpop.permute.xlu0 %797
        %799 = vrot.lane.b32.xlu0 %v504, 64
        %v800 = vpop.permute.xlu0 %799
        %801 = vrot.lane.b32.xlu0 %v503, 64
        %v802 = vpop.permute.xlu0 %801
        %803 = vrot.lane.b32.xlu0 %v502, 64
        %v804 = vpop.permute.xlu0 %803
        %805 = vrot.lane.b32.xlu0 %v501, 64
        %v806 = vpop.permute.xlu0 %805
        %807 = vrot.lane.b32.xlu0 %v500, 64
        %v808 = vpop.permute.xlu0 %807
        %809 = vrot.lane.b32.xlu0 %v499, 64
        %v810 = vpop.permute.xlu0 %809
        %811 = vrot.lane.b32.xlu0 %v498, 64
        %v812 = vpop.permute.xlu0 %811
        %813 = vrot.lane.b32.xlu0 %v497, 64
        %v814 = vpop.permute.xlu0 %813
        %815 = vrot.lane.b32.xlu0 %v496, 64
        %v816 = vpop.permute.xlu0 %815
        %817 = vrot.lane.b32.xlu0 %v495, 64
        %v818 = vpop.permute.xlu0 %817
        %819 = vrot.lane.b32.xlu0 %v494, 64
        %v820 = vpop.permute.xlu0 %819
        %821 = vrot.lane.b32.xlu0 %v493, 64
        %v822 = vpop.permute.xlu0 %821
        %823 = vrot.lane.b32.xlu0 %v492, 64
        %v824 = vpop.permute.xlu0 %823
        %825 = vrot.lane.b32.xlu0 %v491, 64
        %v826 = vpop.permute.xlu0 %825
        %827 = vrot.lane.b32.xlu0 %v490, 64
        %v828 = vpop.permute.xlu0 %827
        %829 = vrot.lane.b32.xlu0 %v489, 64
        %v830 = vpop.permute.xlu0 %829
        %831 = vrot.lane.b32.xlu0 %v488, 64
        %v832 = vpop.permute.xlu0 %831
        %833 = vrot.lane.b32.xlu0 %v487, 64
        %v834 = vpop.permute.xlu0 %833
        %835 = vrot.lane.b32.xlu0 %v486, 64
        %v836 = vpop.permute.xlu0 %835
        %837 = vrot.lane.b32.xlu0 %v485, 64
        %v838 = vpop.permute.xlu0 %837
        %839 = vrot.lane.b32.xlu0 %v484, 64
        %v840 = vpop.permute.xlu0 %839
        %841 = vrot.lane.b32.xlu0 %v483, 64
        %v842 = vpop.permute.xlu0 %841
        %843 = vrot.lane.b32.xlu0 %v482, 64
        %v844 = vpop.permute.xlu0 %843
        %845 = vrot.lane.b32.xlu0 %v481, 64
        %v846 = vpop.permute.xlu0 %845
        %847 = vrot.lane.b32.xlu0 %v480, 64
        %v848 = vpop.permute.xlu0 %847
        %849 = vrot.lane.b32.xlu0 %v479, 64
        %v850 = vpop.permute.xlu0 %849
        %851 = vrot.lane.b32.xlu0 %v478, 64
        %v852 = vpop.permute.xlu0 %851
        %853 = vrot.lane.b32.xlu0 %v477, 64
        %v854 = vpop.permute.xlu0 %853
        %855 = vrot.lane.b32.xlu0 %v476, 64
        %v856 = vpop.permute.xlu0 %855
        %857 = vrot.lane.b32.xlu0 %v475, 64
        %v858 = vpop.permute.xlu0 %857
        %859 = vrot.lane.b32.xlu0 %v506, 64
        %v860 = vpop.permute.xlu0 %859
        %925 = vrot.lane.b32.xlu0 %v570, 96
        %v926 = vpop.permute.xlu0 %925
        %927 = vrot.lane.b32.xlu0 %v569, 96
        %v928 = vpop.permute.xlu0 %927
        %929 = vrot.lane.b32.xlu0 %v568, 96
        %v930 = vpop.permute.xlu0 %929
        %931 = vrot.lane.b32.xlu0 %v567, 96
        %v932 = vpop.permute.xlu0 %931
        %933 = vrot.lane.b32.xlu0 %v566, 96
        %v934 = vpop.permute.xlu0 %933
        %935 = vrot.lane.b32.xlu0 %v565, 96
        %v936 = vpop.permute.xlu0 %935
        %937 = vrot.lane.b32.xlu0 %v564, 96
        %v938 = vpop.permute.xlu0 %937
        %939 = vrot.lane.b32.xlu0 %v563, 96
        %v940 = vpop.permute.xlu0 %939
        %941 = vrot.lane.b32.xlu0 %v562, 96
        %v942 = vpop.permute.xlu0 %941
        %943 = vrot.lane.b32.xlu0 %v561, 96
        %v944 = vpop.permute.xlu0 %943
        %945 = vrot.lane.b32.xlu0 %v560, 96
        %v946 = vpop.permute.xlu0 %945
        %947 = vrot.lane.b32.xlu0 %v559, 96
        %v948 = vpop.permute.xlu0 %947
        %949 = vrot.lane.b32.xlu0 %v558, 96
        %v950 = vpop.permute.xlu0 %949
        %951 = vrot.lane.b32.xlu0 %v557, 96
        %v952 = vpop.permute.xlu0 %951
        %953 = vrot.lane.b32.xlu0 %v556, 96
        %v954 = vpop.permute.xlu0 %953
        %955 = vrot.lane.b32.xlu0 %v555, 96
        %v956 = vpop.permute.xlu0 %955
        %957 = vrot.lane.b32.xlu0 %v554, 96
        %v958 = vpop.permute.xlu0 %957
        %959 = vrot.lane.b32.xlu0 %v553, 96
        %v960 = vpop.permute.xlu0 %959
        %961 = vrot.lane.b32.xlu0 %v552, 96
        %v962 = vpop.permute.xlu0 %961
        %963 = vrot.lane.b32.xlu0 %v551, 96
        %v964 = vpop.permute.xlu0 %963
        %965 = vrot.lane.b32.xlu0 %v550, 96
        %v966 = vpop.permute.xlu0 %965
        %967 = vrot.lane.b32.xlu0 %v549, 96
        %v968 = vpop.permute.xlu0 %967
        %969 = vrot.lane.b32.xlu0 %v548, 96
        %v970 = vpop.permute.xlu0 %969
        %971 = vrot.lane.b32.xlu0 %v547, 96
        %v972 = vpop.permute.xlu0 %971
        %973 = vrot.lane.b32.xlu0 %v546, 96
        %v974 = vpop.permute.xlu0 %973
        %975 = vrot.lane.b32.xlu0 %v545, 96
        %v976 = vpop.permute.xlu0 %975
        %977 = vrot.lane.b32.xlu0 %v544, 96
        %v978 = vpop.permute.xlu0 %977
        %979 = vrot.lane.b32.xlu0 %v543, 96
        %v980 = vpop.permute.xlu0 %979
        %981 = vrot.lane.b32.xlu0 %v542, 96
        %v982 = vpop.permute.xlu0 %981
        %983 = vrot.lane.b32.xlu0 %v541, 96
        %v984 = vpop.permute.xlu0 %983
        %985 = vrot.lane.b32.xlu0 %v540, 96
        %v986 = vpop.permute.xlu0 %985
        %987 = vrot.lane.b32.xlu0 %v571, 96
        %v988 = vpop.permute.xlu0 %987
        %vm1021 = vcmask 261120
        %v1022 = vsel %vm1021, %v343, %v670
        %v1023 = vsel %vm1021, %v344, %v672
        %v1024 = vsel %vm1021, %v345, %v674
        %v1025 = vsel %vm1021, %v346, %v676
        %v1026 = vsel %vm1021, %v347, %v678
        %v1027 = vsel %vm1021, %v348, %v680
        %v1028 = vsel %vm1021, %v349, %v682
        %v1029 = vsel %vm1021, %v350, %v684
        %v1030 = vsel %vm1021, %v351, %v686
        %v1031 = vsel %vm1021, %v352, %v688
        %v1032 = vsel %vm1021, %v353, %v690
        %v1033 = vsel %vm1021, %v354, %v692
        %v1034 = vsel %vm1021, %v355, %v694
        %v1035 = vsel %vm1021, %v356, %v696
        %v1036 = vsel %vm1021, %v357, %v698
        %v1037 = vsel %vm1021, %v358, %v700
        %v1038 = vsel %vm1021, %v359, %v702
        %v1039 = vsel %vm1021, %v360, %v704
        %v1040 = vsel %vm1021, %v361, %v706
        %v1041 = vsel %vm1021, %v362, %v708
        %v1042 = vsel %vm1021, %v363, %v710
        %v1043 = vsel %vm1021, %v364, %v712
        %v1044 = vsel %vm1021, %v365, %v714
        %v1045 = vsel %vm1021, %v366, %v716
        %v1046 = vsel %vm1021, %v367, %v718
        %v1047 = vsel %vm1021, %v368, %v720
        %v1048 = vsel %vm1021, %v369, %v722
        %v1049 = vsel %vm1021, %v370, %v724
        %v1050 = vsel %vm1021, %v371, %v726
        %v1051 = vsel %vm1021, %v372, %v728
        %v1052 = vsel %vm1021, %v373, %v730
        %v1053 = vsel %vm1021, %v374, %v732
        %vm1054 = vcmask 523264
        %v1055 = vsel %vm1054, %v1022, %v798
        %v1056 = vsel %vm1054, %v1023, %v800
        %v1057 = vsel %vm1054, %v1024, %v802
        %v1058 = vsel %vm1054, %v1025, %v804
        %v1059 = vsel %vm1054, %v1026, %v806
        %v1060 = vsel %vm1054, %v1027, %v808
        %v1061 = vsel %vm1054, %v1028, %v810
        %v1062 = vsel %vm1054, %v1029, %v812
        %v1063 = vsel %vm1054, %v1030, %v814
        %v1064 = vsel %vm1054, %v1031, %v816
        %v1065 = vsel %vm1054, %v1032, %v818
        %v1066 = vsel %vm1054, %v1033, %v820
        %v1067 = vsel %vm1054, %v1034, %v822
        %v1068 = vsel %vm1054, %v1035, %v824
        %v1069 = vsel %vm1054, %v1036, %v826
        %v1070 = vsel %vm1054, %v1037, %v828
        %v1071 = vsel %vm1054, %v1038, %v830
        %v1072 = vsel %vm1054, %v1039, %v832
        %v1073 = vsel %vm1054, %v1040, %v834
        %v1074 = vsel %vm1054, %v1041, %v836
        %v1075 = vsel %vm1054, %v1042, %v838
        %v1076 = vsel %vm1054, %v1043, %v840
        %v1077 = vsel %vm1054, %v1044, %v842
        %v1078 = vsel %vm1054, %v1045, %v844
        %v1079 = vsel %vm1054, %v1046, %v846
        %v1080 = vsel %vm1054, %v1047, %v848
        %v1081 = vsel %vm1054, %v1048, %v850
        %v1082 = vsel %vm1054, %v1049, %v852
        %v1083 = vsel %vm1054, %v1050, %v854
        %v1084 = vsel %vm1054, %v1051, %v856
        %v1085 = vsel %vm1054, %v1052, %v858
        %v1086 = vsel %vm1054, %v1053, %v860
        %vm1087 = vcmask 785408
        %v1088 = vsel %vm1087, %v1055, %v926
        %v1089 = vsel %vm1087, %v1056, %v928
        %v1090 = vsel %vm1087, %v1057, %v930
        %v1091 = vsel %vm1087, %v1058, %v932
        %v1092 = vsel %vm1087, %v1059, %v934
        %v1093 = vsel %vm1087, %v1060, %v936
        %v1094 = vsel %vm1087, %v1061, %v938
        %v1095 = vsel %vm1087, %v1062, %v940
        %v1096 = vsel %vm1087, %v1063, %v942
        %v1097 = vsel %vm1087, %v1064, %v944
        %v1098 = vsel %vm1087, %v1065, %v946
        %v1099 = vsel %vm1087, %v1066, %v948
        %v1100 = vsel %vm1087, %v1067, %v950
        %v1101 = vsel %vm1087, %v1068, %v952
        %v1102 = vsel %vm1087, %v1069, %v954
        %v1103 = vsel %vm1087, %v1070, %v956
        %v1104 = vsel %vm1087, %v1071, %v958
        %v1105 = vsel %vm1087, %v1072, %v960
        %v1106 = vsel %vm1087, %v1073, %v962
        %v1107 = vsel %vm1087, %v1074, %v964
        %v1108 = vsel %vm1087, %v1075, %v966
        %v1109 = vsel %vm1087, %v1076, %v968
        %v1110 = vsel %vm1087, %v1077, %v970
        %v1111 = vsel %vm1087, %v1078, %v972
        %v1112 = vsel %vm1087, %v1079, %v974
        %v1113 = vsel %vm1087, %v1080, %v976
        %v1114 = vsel %vm1087, %v1081, %v978
        %v1115 = vsel %vm1087, %v1082, %v980
        %v1116 = vsel %vm1087, %v1083, %v982
        %v1117 = vsel %vm1087, %v1084, %v984
        %v1118 = vsel %vm1087, %v1085, %v986
        %v1119 = vsel %vm1087, %v1086, %v988
        %v1120 = vpack.c.bf16 %v1089, %v1088
        %v1121 = vpack.c.bf16 %v634, %v635
        %v1122 = vpack.c.bf16 %v1091, %v1090
        %v1123 = vpack.c.bf16 %v632, %v633
        %v1124 = vpack.c.bf16 %v1093, %v1092
        %v1125 = vpack.c.bf16 %v630, %v631
        %v1126 = vpack.c.bf16 %v1095, %v1094
        %v1127 = vpack.c.bf16 %v628, %v629
        %v1128 = vpack.c.bf16 %v1097, %v1096
        %v1129 = vpack.c.bf16 %v626, %v627
        %v1130 = vpack.c.bf16 %v1099, %v1098
        %v1131 = vpack.c.bf16 %v624, %v625
        %v1132 = vpack.c.bf16 %v1101, %v1100
        %v1133 = vpack.c.bf16 %v622, %v623
        %v1134 = vpack.c.bf16 %v1103, %v1102
        %v1135 = vpack.c.bf16 %v620, %v621
        %v1136 = vpack.c.bf16 %v1105, %v1104
        %v1137 = vpack.c.bf16 %v618, %v619
        %v1138 = vpack.c.bf16 %v1107, %v1106
        %v1139 = vpack.c.bf16 %v616, %v617
        %v1140 = vpack.c.bf16 %v1109, %v1108
        %v1141 = vpack.c.bf16 %v614, %v615
        %v1142 = vpack.c.bf16 %v1111, %v1110
        %v1143 = vpack.c.bf16 %v612, %v613
        %v1144 = vpack.c.bf16 %v1113, %v1112
        %v1145 = vpack.c.bf16 %v610, %v611
        %v1146 = vpack.c.bf16 %v1115, %v1114
        %v1147 = vpack.c.bf16 %v608, %v609
        %v1148 = vpack.c.bf16 %v1117, %v1116
        %v1149 = vpack.c.bf16 %v606, %v607
        %v1150 = vpack.c.bf16 %v1119, %v1118
        %v1151 = vpack.c.bf16 %v636, %v605
        %v1152 = vld [vmem:[%s1] sm:$0xf]
        %v1153 = vld [vmem:[%s1 + $0x4] sm:$0xf]
        %v1154 = vld [vmem:[%s1 + $0x8] sm:$0xf]
        %v1155 = vld [vmem:[%s1 + $0xc] sm:$0xf]
        %v1156 = vld [vmem:[%s1 + $0x10] sm:$0xf]
        %v1157 = vld [vmem:[%s1 + $0x14] sm:$0xf]
        %v1158 = vld [vmem:[%s1 + $0x18] sm:$0xf]
        %v1159 = vld [vmem:[%s1 + $0x1c] sm:$0xf]
        %v1160 = vld [vmem:[%s1 + $0x20] sm:$0xf]
        %v1161 = vld [vmem:[%s1 + $0x24] sm:$0xf]
        %v1162 = vld [vmem:[%s1 + $0x28] sm:$0xf]
        %v1163 = vld [vmem:[%s1 + $0x2c] sm:$0xf]
        %v1164 = vld [vmem:[%s1 + $0x30] sm:$0xf]
        %v1165 = vld [vmem:[%s1 + $0x34] sm:$0xf]
        %v1166 = vld [vmem:[%s1 + $0x38] sm:$0xf]
        %v1167 = vld [vmem:[%s1 + $0x3c] sm:$0xf]
        %v1168 = vld [vmem:[%s1 + $0x40] sm:$0xf]
        %v1169 = vld [vmem:[%s1 + $0x44] sm:$0xf]
        %v1170 = vld [vmem:[%s1 + $0x48] sm:$0xf]
        %v1171 = vld [vmem:[%s1 + $0x4c] sm:$0xf]
        %v1172 = vld [vmem:[%s2] sm:$0x1]
        %v1174 = vperm.slane %v1172, 0
        %v1196 = vunpack.c.l.b16 %v1152
        %v1197 = vunpack.c.l.b16 %v1153
        %v1198 = vunpack.c.l.b16 %v1154
        %v1199 = vunpack.c.l.b16 %v1155
        %v1200 = vunpack.c.l.b16 %v1156
        %v1201 = vunpack.c.l.b16 %v1157
        %v1202 = vunpack.c.l.b16 %v1158
        %v1203 = vunpack.c.l.b16 %v1159
        %v1204 = vunpack.c.l.b16 %v1160
        %v1205 = vunpack.c.l.b16 %v1161
        %v1206 = vunpack.c.l.b16 %v1162
        %v1207 = vunpack.c.l.b16 %v1163
        %v1208 = vunpack.c.l.b16 %v1164
        %v1209 = vunpack.c.l.b16 %v1165
        %v1210 = vunpack.c.l.b16 %v1166
        %v1211 = vunpack.c.l.b16 %v1167
        %v1212 = vunpack.c.l.b16 %v1168
        %v1213 = vunpack.c.l.b16 %v1169
        %v1214 = vunpack.c.l.b16 %v1170
        %v1215 = vunpack.c.l.b16 %v1171
        %v1216 = vpack.c.b16 %v1197, %v1196
        %v1217 = vpack.c.b16 %v1199, %v1198
        %v1218 = vpack.c.b16 %v1201, %v1200
        %v1219 = vpack.c.b16 %v1203, %v1202
        %v1220 = vpack.c.b16 %v1205, %v1204
        %v1221 = vpack.c.b16 %v1207, %v1206
        %v1222 = vpack.c.b16 %v1209, %v1208
        %v1223 = vpack.c.b16 %v1211, %v1210
        %v1224 = vpack.c.b16 %v1213, %v1212
        %v1225 = vpack.c.b16 %v1215, %v1214
        %v1237 = vsel %vm1021, %v1121, 0
        %v1240 = vsel %vm1021, %v1123, 0
        %v1243 = vsel %vm1021, %v1125, 0
        %v1246 = vsel %vm1021, %v1127, 0
        %v1249 = vsel %vm1021, %v1129, 0
        %v1252 = vsel %vm1021, %v1131, 0
        %v1255 = vsel %vm1021, %v1133, 0
        %v1258 = vsel %vm1021, %v1135, 0
        %v1261 = vsel %vm1021, %v1137, 0
        %v1264 = vsel %vm1021, %v1139, 0
        %v1267 = vsel %vm1021, %v1141, 0
        %v1270 = vsel %vm1021, %v1143, 0
        %v1273 = vsel %vm1021, %v1145, 0
        %v1276 = vsel %vm1021, %v1147, 0
        %v1279 = vsel %vm1021, %v1149, 0
        %v1282 = vsel %vm1021, %v1151, 0
        %1284 = vmatpush.bf16.msra.mxu0 %v1223
        %1285 = vmatpush.bf16.msra.mxu0 %v1222
        %1286 = vmatpush.bf16.msra.mxu0 %v1221
        %1287 = vmatpush.bf16.msra.mxu0 %v1220
        %1288 = vmatpush.bf16.msra.mxu0 %v1219
        %1289 = vmatpush.bf16.msra.mxu0 %v1218
        %1290 = vmatpush.bf16.msra.mxu0 %v1217
        %1291 = vmatpush.bf16.msra.mxu0 %v1216
        %1292 = vmatmul.bf16.gmra.mxu0 %v1120
        %v1293 = vpop.f32.mrf.mxu0
        %v1294 = vadd.f32 %v1174, %v1293
        %v1295 = vpop.f32.mrf.mxu0
        %v1296 = vadd.f32 %v1174, %v1295
        %1297 = vmatmul.bf16.gmra.mxu0 %v1122
        %v1298 = vpop.f32.mrf.mxu0
        %v1299 = vadd.f32 %v1174, %v1298
        %v1300 = vpop.f32.mrf.mxu0
        %v1301 = vadd.f32 %v1174, %v1300
        %1302 = vmatmul.bf16.gmra.mxu0 %v1124
        %v1303 = vpop.f32.mrf.mxu0
        %v1304 = vadd.f32 %v1174, %v1303
        %v1305 = vpop.f32.mrf.mxu0
        %v1306 = vadd.f32 %v1174, %v1305
        %1307 = vmatmul.bf16.gmra.mxu0 %v1126
        %v1308 = vpop.f32.mrf.mxu0
        %v1309 = vadd.f32 %v1174, %v1308
        %v1310 = vpop.f32.mrf.mxu0
        %v1311 = vadd.f32 %v1174, %v1310
        %1312 = vmatmul.bf16.gmra.mxu0 %v1128
        %v1313 = vpop.f32.mrf.mxu0
        %v1314 = vadd.f32 %v1174, %v1313
        %v1315 = vpop.f32.mrf.mxu0
        %v1316 = vadd.f32 %v1174, %v1315
        %1317 = vmatmul.bf16.gmra.mxu0 %v1130
        %v1318 = vpop.f32.mrf.mxu0
        %v1319 = vadd.f32 %v1174, %v1318
        %v1320 = vpop.f32.mrf.mxu0
        %v1321 = vadd.f32 %v1174, %v1320
        %1322 = vmatmul.bf16.gmra.mxu0 %v1132
        %v1323 = vpop.f32.mrf.mxu0
        %v1324 = vadd.f32 %v1174, %v1323
        %v1325 = vpop.f32.mrf.mxu0
        %v1326 = vadd.f32 %v1174, %v1325
        %1327 = vmatmul.bf16.gmra.mxu0 %v1134
        %v1328 = vpop.f32.mrf.mxu0
        %v1329 = vadd.f32 %v1174, %v1328
        %v1330 = vpop.f32.mrf.mxu0
        %v1331 = vadd.f32 %v1174, %v1330
        %1332 = vmatmul.bf16.gmra.mxu0 %v1136
        %v1333 = vpop.f32.mrf.mxu0
        %v1334 = vadd.f32 %v1174, %v1333
        %v1335 = vpop.f32.mrf.mxu0
        %v1336 = vadd.f32 %v1174, %v1335
        %1337 = vmatmul.bf16.gmra.mxu0 %v1138
        %v1338 = vpop.f32.mrf.mxu0
        %v1339 = vadd.f32 %v1174, %v1338
        %v1340 = vpop.f32.mrf.mxu0
        %v1341 = vadd.f32 %v1174, %v1340
        %1342 = vmatmul.bf16.gmra.mxu0 %v1140
        %v1343 = vpop.f32.mrf.mxu0
        %v1344 = vadd.f32 %v1174, %v1343
        %v1345 = vpop.f32.mrf.mxu0
        %v1346 = vadd.f32 %v1174, %v1345
        %1347 = vmatmul.bf16.gmra.mxu0 %v1142
        %v1348 = vpop.f32.mrf.mxu0
        %v1349 = vadd.f32 %v1174, %v1348
        %v1350 = vpop.f32.mrf.mxu0
        %v1351 = vadd.f32 %v1174, %v1350
        %1352 = vmatmul.bf16.gmra.mxu0 %v1144
        %v1353 = vpop.f32.mrf.mxu0
        %v1354 = vadd.f32 %v1174, %v1353
        %v1355 = vpop.f32.mrf.mxu0
        %v1356 = vadd.f32 %v1174, %v1355
        %1357 = vmatmul.bf16.gmra.mxu0 %v1146
        %v1358 = vpop.f32.mrf.mxu0
        %v1359 = vadd.f32 %v1174, %v1358
        %v1360 = vpop.f32.mrf.mxu0
        %v1361 = vadd.f32 %v1174, %v1360
        %1362 = vmatmul.bf16.gmra.mxu0 %v1148
        %v1363 = vpop.f32.mrf.mxu0
        %v1364 = vadd.f32 %v1174, %v1363
        %v1365 = vpop.f32.mrf.mxu0
        %v1366 = vadd.f32 %v1174, %v1365
        %1367 = vmatmul.bf16.gmra.mxu0 %v1150
        %v1368 = vpop.f32.mrf.mxu0
        %v1369 = vadd.f32 %v1174, %v1368
        %v1370 = vpop.f32.mrf.mxu0
        %v1371 = vadd.f32 %v1174, %v1370
        %1372 = vdwg.mxu0
        %1373 = vmatpush.bf16.msra.mxu0 0
        %1374 = vmatpush.bf16.msra.mxu0 0
        %1375 = vmatpush.bf16.msra.mxu0 0
        %1376 = vmatpush.bf16.msra.mxu0 0
        %1377 = vmatpush.bf16.msra.mxu0 0
        %1378 = vmatpush.bf16.msra.mxu0 0
        %1379 = vmatpush.bf16.msra.mxu0 %v1225
        %1380 = vmatpush.bf16.msra.mxu0 %v1224
        %1381 = vmatmul.bf16.gmra.mxu0 %v1237
        %v1382 = vpop.f32.mrf.mxu0
        %v1383 = vadd.f32 %v1294, %v1382
        %v1384 = vpop.f32.mrf.mxu0
        %v1385 = vadd.f32 %v1296, %v1384
        %1386 = vmatmul.bf16.gmra.mxu0 %v1240
        %v1387 = vpop.f32.mrf.mxu0
        %v1388 = vadd.f32 %v1299, %v1387
        %v1389 = vpop.f32.mrf.mxu0
        %v1390 = vadd.f32 %v1301, %v1389
        %1391 = vmatmul.bf16.gmra.mxu0 %v1243
        %v1392 = vpop.f32.mrf.mxu0
        %v1393 = vadd.f32 %v1304, %v1392
        %v1394 = vpop.f32.mrf.mxu0
        %v1395 = vadd.f32 %v1306, %v1394
        %1396 = vmatmul.bf16.gmra.mxu0 %v1246
        %v1397 = vpop.f32.mrf.mxu0
        %v1398 = vadd.f32 %v1309, %v1397
        %v1399 = vpop.f32.mrf.mxu0
        %v1400 = vadd.f32 %v1311, %v1399
        %1401 = vmatmul.bf16.gmra.mxu0 %v1249
        %v1402 = vpop.f32.mrf.mxu0
        %v1403 = vadd.f32 %v1314, %v1402
        %v1404 = vpop.f32.mrf.mxu0
        %v1405 = vadd.f32 %v1316, %v1404
        %1406 = vmatmul.bf16.gmra.mxu0 %v1252
        %v1407 = vpop.f32.mrf.mxu0
        %v1408 = vadd.f32 %v1319, %v1407
        %v1409 = vpop.f32.mrf.mxu0
        %v1410 = vadd.f32 %v1321, %v1409
        %1411 = vmatmul.bf16.gmra.mxu0 %v1255
        %v1412 = vpop.f32.mrf.mxu0
        %v1413 = vadd.f32 %v1324, %v1412
        %v1414 = vpop.f32.mrf.mxu0
        %v1415 = vadd.f32 %v1326, %v1414
        %1416 = vmatmul.bf16.gmra.mxu0 %v1258
        %v1417 = vpop.f32.mrf.mxu0
        %v1418 = vadd.f32 %v1329, %v1417
        %v1419 = vpop.f32.mrf.mxu0
        %v1420 = vadd.f32 %v1331, %v1419
        %1421 = vmatmul.bf16.gmra.mxu0 %v1261
        %v1422 = vpop.f32.mrf.mxu0
        %v1423 = vadd.f32 %v1334, %v1422
        %v1424 = vpop.f32.mrf.mxu0
        %v1425 = vadd.f32 %v1336, %v1424
        %1426 = vmatmul.bf16.gmra.mxu0 %v1264
        %v1427 = vpop.f32.mrf.mxu0
        %v1428 = vadd.f32 %v1339, %v1427
        %v1429 = vpop.f32.mrf.mxu0
        %v1430 = vadd.f32 %v1341, %v1429
        %1431 = vmatmul.bf16.gmra.mxu0 %v1267
        %v1432 = vpop.f32.mrf.mxu0
        %v1433 = vadd.f32 %v1344, %v1432
        %v1434 = vpop.f32.mrf.mxu0
        %v1435 = vadd.f32 %v1346, %v1434
        %1436 = vmatmul.bf16.gmra.mxu0 %v1270
        %v1437 = vpop.f32.mrf.mxu0
        %v1438 = vadd.f32 %v1349, %v1437
        %v1439 = vpop.f32.mrf.mxu0
        %v1440 = vadd.f32 %v1351, %v1439
        %1441 = vmatmul.bf16.gmra.mxu0 %v1273
        %v1442 = vpop.f32.mrf.mxu0
        %v1443 = vadd.f32 %v1354, %v1442
        %v1444 = vpop.f32.mrf.mxu0
        %v1445 = vadd.f32 %v1356, %v1444
        %1446 = vmatmul.bf16.gmra.mxu0 %v1276
        %v1447 = vpop.f32.mrf.mxu0
        %v1448 = vadd.f32 %v1359, %v1447
        %v1449 = vpop.f32.mrf.mxu0
        %v1450 = vadd.f32 %v1361, %v1449
        %1451 = vmatmul.bf16.gmra.mxu0 %v1279
        %v1452 = vpop.f32.mrf.mxu0
        %v1453 = vadd.f32 %v1364, %v1452
        %v1454 = vpop.f32.mrf.mxu0
        %v1455 = vadd.f32 %v1366, %v1454
        %1456 = vmatmul.bf16.gmra.mxu0 %v1282
        %v1457 = vpop.f32.mrf.mxu0
        %v1458 = vadd.f32 %v1369, %v1457
        %v1459 = vpop.f32.mrf.mxu0
        %v1460 = vadd.f32 %v1371, %v1459
        %1461 = vdwg.mxu0
        %v1462 = vmax.f32 %v1383, 0.0
        %v1463 = vmax.f32 %v1385, 0.0
        %v1464 = vmax.f32 %v1388, 0.0
        %v1465 = vmax.f32 %v1390, 0.0
        %v1466 = vmax.f32 %v1393, 0.0
        %v1467 = vmax.f32 %v1395, 0.0
        %v1468 = vmax.f32 %v1398, 0.0
        %v1469 = vmax.f32 %v1400, 0.0
        %v1470 = vmax.f32 %v1403, 0.0
        %v1471 = vmax.f32 %v1405, 0.0
        %v1472 = vmax.f32 %v1408, 0.0
        %v1473 = vmax.f32 %v1410, 0.0
        %v1474 = vmax.f32 %v1413, 0.0
        %v1475 = vmax.f32 %v1415, 0.0
        %v1476 = vmax.f32 %v1418, 0.0
        %v1477 = vmax.f32 %v1420, 0.0
        %v1478 = vmax.f32 %v1423, 0.0
        %v1479 = vmax.f32 %v1425, 0.0
        %v1480 = vmax.f32 %v1428, 0.0
        %v1481 = vmax.f32 %v1430, 0.0
        %v1482 = vmax.f32 %v1433, 0.0
        %v1483 = vmax.f32 %v1435, 0.0
        %v1484 = vmax.f32 %v1438, 0.0
        %v1485 = vmax.f32 %v1440, 0.0
        %v1486 = vmax.f32 %v1443, 0.0
        %v1487 = vmax.f32 %v1445, 0.0
        %v1488 = vmax.f32 %v1448, 0.0
        %v1489 = vmax.f32 %v1450, 0.0
        %v1490 = vmax.f32 %v1453, 0.0
        %v1491 = vmax.f32 %v1455, 0.0
        %v1492 = vmax.f32 %v1458, 0.0
        %v1493 = vmax.f32 %v1460, 0.0
        %v1494 = vld [vmem:[%s3] sm:$0xff]
        %v1495 = vld [vmem:[%s3 + $0x8] sm:$0xff]
        %v1496 = vmul.f32 %v1462, %v1494
        %v1497 = vmul.f32 %v1463, %v1495
        %v1498 = vmul.f32 %v1464, %v1494
        %v1499 = vmul.f32 %v1465, %v1495
        %v1500 = vmul.f32 %v1466, %v1494
        %v1501 = vmul.f32 %v1467, %v1495
        %v1502 = vmul.f32 %v1468, %v1494
        %v1503 = vmul.f32 %v1469, %v1495
        %v1504 = vmul.f32 %v1470, %v1494
        %v1505 = vmul.f32 %v1471, %v1495
        %v1506 = vmul.f32 %v1472, %v1494
        %v1507 = vmul.f32 %v1473, %v1495
        %v1508 = vmul.f32 %v1474, %v1494
        %v1509 = vmul.f32 %v1475, %v1495
        %v1510 = vmul.f32 %v1476, %v1494
        %v1511 = vmul.f32 %v1477, %v1495
        %v1512 = vmul.f32 %v1478, %v1494
        %v1513 = vmul.f32 %v1479, %v1495
        %v1514 = vmul.f32 %v1480, %v1494
        %v1515 = vmul.f32 %v1481, %v1495
        %v1516 = vmul.f32 %v1482, %v1494
        %v1517 = vmul.f32 %v1483, %v1495
        %v1518 = vmul.f32 %v1484, %v1494
        %v1519 = vmul.f32 %v1485, %v1495
        %v1520 = vmul.f32 %v1486, %v1494
        %v1521 = vmul.f32 %v1487, %v1495
        %v1522 = vmul.f32 %v1488, %v1494
        %v1523 = vmul.f32 %v1489, %v1495
        %v1524 = vmul.f32 %v1490, %v1494
        %v1525 = vmul.f32 %v1491, %v1495
        %v1526 = vmul.f32 %v1492, %v1494
        %v1527 = vmul.f32 %v1493, %v1495
        %v1528 = vmax.f32 %v1496, %v1497
        %v1529 = vrot.slane %v1528, 4
        %v1530 = vmax.f32 %v1528, %v1529
        %v1531 = vrot.slane %v1530, 2
        %v1532 = vmax.f32 %v1530, %v1531
        %v1533 = vrot.slane %v1532, 1
        %v1534 = vmax.f32 %v1532, %v1533
        %v1535 = vmax.f32 %v1498, %v1499
        %v1536 = vrot.slane %v1535, 4
        %v1537 = vmax.f32 %v1535, %v1536
        %v1538 = vrot.slane %v1537, 2
        %v1539 = vmax.f32 %v1537, %v1538
        %v1540 = vrot.slane %v1539, 1
        %v1541 = vmax.f32 %v1539, %v1540
        %v1542 = vmax.f32 %v1500, %v1501
        %v1543 = vrot.slane %v1542, 4
        %v1544 = vmax.f32 %v1542, %v1543
        %v1545 = vrot.slane %v1544, 2
        %v1546 = vmax.f32 %v1544, %v1545
        %v1547 = vrot.slane %v1546, 1
        %v1548 = vmax.f32 %v1546, %v1547
        %v1549 = vmax.f32 %v1502, %v1503
        %v1550 = vrot.slane %v1549, 4
        %v1551 = vmax.f32 %v1549, %v1550
        %v1552 = vrot.slane %v1551, 2
        %v1553 = vmax.f32 %v1551, %v1552
        %v1554 = vrot.slane %v1553, 1
        %v1555 = vmax.f32 %v1553, %v1554
        %v1556 = vmax.f32 %v1504, %v1505
        %v1557 = vrot.slane %v1556, 4
        %v1558 = vmax.f32 %v1556, %v1557
        %v1559 = vrot.slane %v1558, 2
        %v1560 = vmax.f32 %v1558, %v1559
        %v1561 = vrot.slane %v1560, 1
        %v1562 = vmax.f32 %v1560, %v1561
        %v1563 = vmax.f32 %v1506, %v1507
        %v1564 = vrot.slane %v1563, 4
        %v1565 = vmax.f32 %v1563, %v1564
        %v1566 = vrot.slane %v1565, 2
        %v1567 = vmax.f32 %v1565, %v1566
        %v1568 = vrot.slane %v1567, 1
        %v1569 = vmax.f32 %v1567, %v1568
        %v1570 = vmax.f32 %v1508, %v1509
        %v1571 = vrot.slane %v1570, 4
        %v1572 = vmax.f32 %v1570, %v1571
        %v1573 = vrot.slane %v1572, 2
        %v1574 = vmax.f32 %v1572, %v1573
        %v1575 = vrot.slane %v1574, 1
        %v1576 = vmax.f32 %v1574, %v1575
        %v1577 = vmax.f32 %v1510, %v1511
        %v1578 = vrot.slane %v1577, 4
        %v1579 = vmax.f32 %v1577, %v1578
        %v1580 = vrot.slane %v1579, 2
        %v1581 = vmax.f32 %v1579, %v1580
        %v1582 = vrot.slane %v1581, 1
        %v1583 = vmax.f32 %v1581, %v1582
        %v1584 = vmax.f32 %v1512, %v1513
        %v1585 = vrot.slane %v1584, 4
        %v1586 = vmax.f32 %v1584, %v1585
        %v1587 = vrot.slane %v1586, 2
        %v1588 = vmax.f32 %v1586, %v1587
        %v1589 = vrot.slane %v1588, 1
        %v1590 = vmax.f32 %v1588, %v1589
        %v1591 = vmax.f32 %v1514, %v1515
        %v1592 = vrot.slane %v1591, 4
        %v1593 = vmax.f32 %v1591, %v1592
        %v1594 = vrot.slane %v1593, 2
        %v1595 = vmax.f32 %v1593, %v1594
        %v1596 = vrot.slane %v1595, 1
        %v1597 = vmax.f32 %v1595, %v1596
        %v1598 = vmax.f32 %v1516, %v1517
        %v1599 = vrot.slane %v1598, 4
        %v1600 = vmax.f32 %v1598, %v1599
        %v1601 = vrot.slane %v1600, 2
        %v1602 = vmax.f32 %v1600, %v1601
        %v1603 = vrot.slane %v1602, 1
        %v1604 = vmax.f32 %v1602, %v1603
        %v1605 = vmax.f32 %v1518, %v1519
        %v1606 = vrot.slane %v1605, 4
        %v1607 = vmax.f32 %v1605, %v1606
        %v1608 = vrot.slane %v1607, 2
        %v1609 = vmax.f32 %v1607, %v1608
        %v1610 = vrot.slane %v1609, 1
        %v1611 = vmax.f32 %v1609, %v1610
        %v1612 = vmax.f32 %v1520, %v1521
        %v1613 = vrot.slane %v1612, 4
        %v1614 = vmax.f32 %v1612, %v1613
        %v1615 = vrot.slane %v1614, 2
        %v1616 = vmax.f32 %v1614, %v1615
        %v1617 = vrot.slane %v1616, 1
        %v1618 = vmax.f32 %v1616, %v1617
        %v1619 = vmax.f32 %v1522, %v1523
        %v1620 = vrot.slane %v1619, 4
        %v1621 = vmax.f32 %v1619, %v1620
        %v1622 = vrot.slane %v1621, 2
        %v1623 = vmax.f32 %v1621, %v1622
        %v1624 = vrot.slane %v1623, 1
        %v1625 = vmax.f32 %v1623, %v1624
        %v1626 = vmax.f32 %v1524, %v1525
        %v1627 = vrot.slane %v1626, 4
        %v1628 = vmax.f32 %v1626, %v1627
        %v1629 = vrot.slane %v1628, 2
        %v1630 = vmax.f32 %v1628, %v1629
        %v1631 = vrot.slane %v1630, 1
        %v1632 = vmax.f32 %v1630, %v1631
        %v1633 = vmax.f32 %v1526, %v1527
        %v1634 = vrot.slane %v1633, 4
        %v1635 = vmax.f32 %v1633, %v1634
        %v1636 = vrot.slane %v1635, 2
        %v1637 = vmax.f32 %v1635, %v1636
        %v1638 = vrot.slane %v1637, 1
        %v1639 = vmax.f32 %v1637, %v1638
        %v1640 = vpack.c.bf16 %v1534, %v1534
        %v1641 = vpack.c.bf16 %v1541, %v1541
        %v1642 = vpack.c.bf16 %v1548, %v1548
        %v1643 = vpack.c.bf16 %v1555, %v1555
        %v1644 = vpack.c.bf16 %v1562, %v1562
        %v1645 = vpack.c.bf16 %v1569, %v1569
        %v1646 = vpack.c.bf16 %v1576, %v1576
        %v1647 = vpack.c.bf16 %v1583, %v1583
        %v1648 = vpack.c.bf16 %v1590, %v1590
        %v1649 = vpack.c.bf16 %v1597, %v1597
        %v1650 = vpack.c.bf16 %v1604, %v1604
        %v1651 = vpack.c.bf16 %v1611, %v1611
        %v1652 = vpack.c.bf16 %v1618, %v1618
        %v1653 = vpack.c.bf16 %v1625, %v1625
        %v1654 = vpack.c.bf16 %v1632, %v1632
        %v1655 = vpack.c.bf16 %v1639, %v1639
        %v1656 = vld [vmem:[%s4] sm:$0xf]
        %v1657 = vld [vmem:[%s4 + $0x4] sm:$0xf]
        %v1658 = vld [vmem:[%s4 + $0x8] sm:$0xf]
        %v1659 = vld [vmem:[%s4 + $0xc] sm:$0xf]
        %v1660 = vld [vmem:[%s4 + $0x10] sm:$0xf]
        %v1661 = vld [vmem:[%s4 + $0x14] sm:$0xf]
        %v1662 = vld [vmem:[%s4 + $0x18] sm:$0xf]
        %v1663 = vld [vmem:[%s4 + $0x1c] sm:$0xf]
        %v1664 = vld [vmem:[%s4 + $0x20] sm:$0xf]
        %v1665 = vld [vmem:[%s4 + $0x24] sm:$0xf]
        %v1666 = vld [vmem:[%s4 + $0x28] sm:$0xf]
        %v1667 = vld [vmem:[%s4 + $0x2c] sm:$0xf]
        %v1668 = vld [vmem:[%s4 + $0x30] sm:$0xf]
        %v1669 = vld [vmem:[%s4 + $0x34] sm:$0xf]
        %v1670 = vld [vmem:[%s4 + $0x38] sm:$0xf]
        %v1671 = vld [vmem:[%s4 + $0x3c] sm:$0xf]
        %v1672 = vld [vmem:[%s5] sm:$0x1]
        %v1674 = vperm.slane %v1672, 0
        %v1692 = vunpack.c.l.b16 %v1640
        %v1693 = vunpack.c.l.b16 %v1641
        %v1694 = vunpack.c.l.b16 %v1642
        %v1695 = vunpack.c.l.b16 %v1643
        %v1696 = vunpack.c.l.b16 %v1644
        %v1697 = vunpack.c.l.b16 %v1645
        %v1698 = vunpack.c.l.b16 %v1646
        %v1699 = vunpack.c.l.b16 %v1647
        %v1700 = vunpack.c.l.b16 %v1648
        %v1701 = vunpack.c.l.b16 %v1649
        %v1702 = vunpack.c.l.b16 %v1650
        %v1703 = vunpack.c.l.b16 %v1651
        %v1704 = vunpack.c.l.b16 %v1652
        %v1705 = vunpack.c.l.b16 %v1653
        %v1706 = vunpack.c.l.b16 %v1654
        %v1707 = vunpack.c.l.b16 %v1655
        %vm1708 = vcmask 1041409
        %v1709 = vsel %vm1708, %v1693, %v1692
        %vm1710 = vcmask 1042434
        %v1711 = vsel %vm1710, %v1694, %v1709
        %vm1712 = vcmask 1043459
        %v1713 = vsel %vm1712, %v1695, %v1711
        %vm1714 = vcmask 1044484
        %v1715 = vsel %vm1714, %v1696, %v1713
        %vm1716 = vcmask 1045509
        %v1717 = vsel %vm1716, %v1697, %v1715
        %vm1718 = vcmask 1046534
        %v1719 = vsel %vm1718, %v1698, %v1717
        %vm1720 = vcmask 1047559
        %v1721 = vsel %vm1720, %v1699, %v1719
        %v1722 = vsel %vm1708, %v1701, %v1700
        %v1723 = vsel %vm1710, %v1702, %v1722
        %v1724 = vsel %vm1712, %v1703, %v1723
        %v1725 = vsel %vm1714, %v1704, %v1724
        %v1726 = vsel %vm1716, %v1705, %v1725
        %v1727 = vsel %vm1718, %v1706, %v1726
        %v1728 = vsel %vm1720, %v1707, %v1727
        %v1729 = vpack.c.b16 %v1728, %v1721
        %v1747 = vunpack.c.l.b16 %v1656
        %v1748 = vunpack.c.l.b16 %v1657
        %v1749 = vunpack.c.l.b16 %v1658
        %v1750 = vunpack.c.l.b16 %v1659
        %v1751 = vunpack.c.l.b16 %v1660
        %v1752 = vunpack.c.l.b16 %v1661
        %v1753 = vunpack.c.l.b16 %v1662
        %v1754 = vunpack.c.l.b16 %v1663
        %v1755 = vunpack.c.l.b16 %v1664
        %v1756 = vunpack.c.l.b16 %v1665
        %v1757 = vunpack.c.l.b16 %v1666
        %v1758 = vunpack.c.l.b16 %v1667
        %v1759 = vunpack.c.l.b16 %v1668
        %v1760 = vunpack.c.l.b16 %v1669
        %v1761 = vunpack.c.l.b16 %v1670
        %v1762 = vunpack.c.l.b16 %v1671
        %v1763 = vpack.c.b16 %v1748, %v1747
        %v1764 = vpack.c.b16 %v1750, %v1749
        %v1765 = vpack.c.b16 %v1752, %v1751
        %v1766 = vpack.c.b16 %v1754, %v1753
        %v1767 = vpack.c.b16 %v1756, %v1755
        %v1768 = vpack.c.b16 %v1758, %v1757
        %v1769 = vpack.c.b16 %v1760, %v1759
        %v1770 = vpack.c.b16 %v1762, %v1761
        %1779 = vmatpush.bf16.msra.mxu0 %v1770
        %1780 = vmatpush.bf16.msra.mxu0 %v1769
        %1781 = vmatpush.bf16.msra.mxu0 %v1768
        %1782 = vmatpush.bf16.msra.mxu0 %v1767
        %1783 = vmatpush.bf16.msra.mxu0 %v1766
        %1784 = vmatpush.bf16.msra.mxu0 %v1765
        %1785 = vmatpush.bf16.msra.mxu0 %v1764
        %1786 = vmatpush.bf16.msra.mxu0 %v1763
        %1787 = vmatmul.bf16.gmra.mxu0 %v1729
        %v1788 = vpop.f32.mrf.mxu0
        %v1789 = vadd.f32 %v1674, %v1788
        %v1790 = vpop.f32.mrf.mxu0
        %v1791 = vadd.f32 %v1674, %v1790
        %1792 = vdwg.mxu0
        %v1793 = vmax.f32 %v1789, 0.0
        %v1794 = vmax.f32 %v1791, 0.0
        %v1795 = vpack.c.bf16 %v1794, %v1793
        %v1796 = vld [vmem:[%s6] sm:$0xf]
        %v1797 = vld [vmem:[%s6 + $0x4] sm:$0xf]
        %v1798 = vld [vmem:[%s6 + $0x8] sm:$0xf]
        %v1799 = vld [vmem:[%s6 + $0xc] sm:$0xf]
        %v1800 = vld [vmem:[%s6 + $0x10] sm:$0xf]
        %v1801 = vld [vmem:[%s6 + $0x14] sm:$0xf]
        %v1802 = vld [vmem:[%s6 + $0x18] sm:$0xf]
        %v1803 = vld [vmem:[%s6 + $0x1c] sm:$0xf]
        %v1804 = vld [vmem:[%s6 + $0x20] sm:$0xf]
        %v1805 = vld [vmem:[%s6 + $0x24] sm:$0xf]
        %v1806 = vld [vmem:[%s6 + $0x28] sm:$0xf]
        %v1807 = vld [vmem:[%s6 + $0x2c] sm:$0xf]
        %v1808 = vld [vmem:[%s6 + $0x30] sm:$0xf]
        %v1809 = vld [vmem:[%s6 + $0x34] sm:$0xf]
        %v1810 = vld [vmem:[%s6 + $0x38] sm:$0xf]
        %v1811 = vld [vmem:[%s6 + $0x3c] sm:$0xf]
        %v1812 = vld [vmem:[%s7] sm:$0x1]
        %v1814 = vperm.slane %v1812, 0
        %v1832 = vunpack.c.l.b16 %v1796
        %v1833 = vunpack.c.l.b16 %v1797
        %v1834 = vunpack.c.l.b16 %v1798
        %v1835 = vunpack.c.l.b16 %v1799
        %v1836 = vunpack.c.l.b16 %v1800
        %v1837 = vunpack.c.l.b16 %v1801
        %v1838 = vunpack.c.l.b16 %v1802
        %v1839 = vunpack.c.l.b16 %v1803
        %v1840 = vunpack.c.l.b16 %v1804
        %v1841 = vunpack.c.l.b16 %v1805
        %v1842 = vunpack.c.l.b16 %v1806
        %v1843 = vunpack.c.l.b16 %v1807
        %v1844 = vunpack.c.l.b16 %v1808
        %v1845 = vunpack.c.l.b16 %v1809
        %v1846 = vunpack.c.l.b16 %v1810
        %v1847 = vunpack.c.l.b16 %v1811
        %v1848 = vpack.c.b16 %v1833, %v1832
        %v1849 = vpack.c.b16 %v1835, %v1834
        %v1850 = vpack.c.b16 %v1837, %v1836
        %v1851 = vpack.c.b16 %v1839, %v1838
        %v1852 = vpack.c.b16 %v1841, %v1840
        %v1853 = vpack.c.b16 %v1843, %v1842
        %v1854 = vpack.c.b16 %v1845, %v1844
        %v1855 = vpack.c.b16 %v1847, %v1846
        %1864 = vmatpush.bf16.msra.mxu0 %v1855
        %1865 = vmatpush.bf16.msra.mxu0 %v1854
        %1866 = vmatpush.bf16.msra.mxu0 %v1853
        %1867 = vmatpush.bf16.msra.mxu0 %v1852
        %1868 = vmatpush.bf16.msra.mxu0 %v1851
        %1869 = vmatpush.bf16.msra.mxu0 %v1850
        %1870 = vmatpush.bf16.msra.mxu0 %v1849
        %1871 = vmatpush.bf16.msra.mxu0 %v1848
        %1872 = vmatmul.bf16.gmra.mxu0 %v1795
        %v1873 = vpop.f32.mrf.mxu0
        %v1874 = vadd.f32 %v1814, %v1873
        %v1875 = vpop.f32.mrf.mxu0
        %v1876 = vadd.f32 %v1814, %v1875
        %1877 = vdwg.mxu0
        %1878 = vst [vmem:[%s301] sm:$0xff] %v1874
        %1879 = vst [vmem:[%s301 + $0x8] sm:$0xff] %v1876
        %s1880 = sand.u32 %s203, 1
        %s1881 = scalar_lea.sflag [#allocation3], %s1880
        %s1882 = sand.u32 %s203, 1
        %s1883 = smul.addr %s1882, 16
        %s1884 = scalar_lea.vmem [#allocation2], %s1883
        // Predicated region
        $region53: #{tpu_custom_call.1} parent=51 // pred_check
          %p1885 = pneg %p213
        $region54: #{tpu_custom_call.1} parent=51 // pred_check_branch
          %1887 = sbr.rel (%p1885) target = $region56
        $region55: #{tpu_custom_call.1} parent=51 // pred_region
          %s1888 = smul.u32 2, %s22
          %1890 = vsyncadd %s1881, 0
          %s1891 = smul.addr %s1888, 8
          %s1892 = scalar_lea.hbm %s8, %s1891
          %s1893 = sshll.u32 %s1884, 4
          %s1894 = int_to_ptr.vmem [resolvable:$true] %s1893
          %s1895 = sshll.u32 %s1892, 4
          %s1896 = int_to_ptr.hbm [resolvable:$true] %s1895
          %1901 = dma.vmem_to_hbm [thread:$0]  %s1894, 256, %s1896, %s1881, 128, 128, 8
        $region56: #{tpu_custom_call.1} parent=51 // pred_fallthru
          _
      $region52: #{tpu_custom_call.1} parent=5 // pred_fallthru
        _
      %p1902 = scmp.le.s32.totalorder 2, %s17
      // Predicated region
      $region57: #{tpu_custom_call.1} parent=5 // pred_check
        %p1903 = pneg %p1902
      $region58: #{tpu_custom_call.1} parent=5 // pred_check_branch
        %1905 = sbr.rel (%p1903) target = $region60
      $region59: #{tpu_custom_call.1} parent=5 // pred_region
        %s1906 = ssub.s32 %s17, 2
        // Predicated region
        $region61: #{tpu_custom_call.1} parent=59 // pred_check
          %p1907 = pneg %p219
        $region62: #{tpu_custom_call.1} parent=59 // pred_check_branch
          %1909 = sbr.rel (%p1907) target = $region64
        $region63: #{tpu_custom_call.1} parent=59 // pred_region
          %s1910 = sand.u32 %s204, 1
          %s1911 = scalar_lea.sflag [#allocation3], %s1910
          %s1912 = sand.u32 %s204, 1
          %s1913 = smul.addr %s1912, 16
          %s1914 = scalar_lea.vmem [#allocation2], %s1913
          %1916 = dma.done %s1911, 256
        $region64: #{tpu_custom_call.1} parent=59 // pred_fallthru
          _
      $region60: #{tpu_custom_call.1} parent=5 // pred_fallthru
        _
    $region6: #{tpu_custom_call.1} parent=1 // loop_footer
      %s21 = sadd.s32 1, %s17
    $region7: #{tpu_custom_call.1} parent=1 // loop_footer_branch
      %16 = sbr.rel target = $region3
    $region8: #{tpu_custom_call.1} parent=1 // loop_exit
      _
    %1917 = vsyncpa [#allocation3], 1
    %s1918 = scalar_lea.sflag [#allocation3], 1
    %1919 = vsyncpa %s1918, 1

</llo_original>
